<compile_context>
chip_gen: v6e
topology: v6e:2x2x1
jax: 0.10.0
libtpu: 0.0.40
codegen_flags: <defaults>
</compile_context>

<pallas_src>
import jax
import jax.numpy as jnp
from jax import lax
from jax.experimental import pallas as pl
from jax.experimental.pallas import tpu as pltpu


_TINY_BYTES = 256 * 1024                 # below this, plain XLA beats pallas_call overhead
_MAX_TILE_ROWS = 2048                    # 4 MiB/block at embed_dim=512 f32
_VMEM_LIMIT_BYTES = 32 * 1024 * 1024     # 3 streams x 2 bufs x 4 MiB = 24 MiB live + headroom
                                         # (fits v7x's 64 MiB physical VMEM; trivial for v5e/v6e)


def _prompt_soup_kernel(base_ref, delta_ref, out_ref):
    # Hot path: elementwise add + row-wise L2 normalization.
    # add/mul -> VPU, row reduce -> XLU, rsqrt -> EUP; all hidden under the HBM DMA.
    w = (base_ref[...] + delta_ref[...]).astype(jnp.float32)   # (tile, D)
    norm_sq = jnp.sum(w * w, axis=-1, keepdims=True)           # (tile, 1)
    out_ref[...] = (w * lax.rsqrt(norm_sq)).astype(out_ref.dtype)


def _round_up(x, m):
    return ((x + m - 1) // m) * m


def _choose_tile_classes(n, d, itemsize=4):
    """Pick the row-tile for the streaming kernel.

    Fixed large tile (cap 2048 rows), bounded so 3 streams x 2 pipeline buffers
    stay well inside _VMEM_LIMIT_BYTES, and capped at ~n/2 for mid-size inputs
    so the 1-D 'parallel' grid always has >= 2 steps (both v7x TensorCores work).
    The grid uses cdiv + masked tail, so the tile never has to divide n.
    """
    bytes_per_row = d * itemsize
    budget = _VMEM_LIMIT_BYTES - 8 * 1024 * 1024          # headroom for compiler scratch
    max_rows_by_vmem = max(8, (budget // (6 * bytes_per_row)) // 8 * 8)
    tile = min(_MAX_TILE_ROWS, max_rows_by_vmem)
    if n >= 256:
        tile = min(tile, _round_up(pl.cdiv(n, 2), 8))     # guarantee >= 2 grid steps
    if tile >= n:
        return n                                          # single full block (block == array dim)
    return max(8, tile)


def prompt_soup_forward(base, delta, *, tile_classes=None):
    """base, delta: f32[num_classes, embed_dim] -> row-L2-normalized (base + delta)."""
    assert base.shape == delta.shape and base.ndim == 2
    n, d = base.shape
    itemsize = base.dtype.itemsize
    total_bytes = n * d * itemsize

    if tile_classes is None and total_bytes < _TINY_BYTES:
        # Typical PromptSoup scale (tens/hundreds of classes): a fused XLA pass is
        # faster than the fixed pallas_call launch + DMA-in/compute/DMA-out overhead.
        w = base + delta
        return w * lax.rsqrt(jnp.sum(w * w, axis=1, keepdims=True))

    if tile_classes is None:
        tile_classes = _choose_tile_classes(n, d, itemsize)

    grid = (pl.cdiv(n, tile_classes),)                    # ragged last block is masked by Pallas
    spec = pl.BlockSpec((tile_classes, d), lambda i: (i, 0))

    return pl.pallas_call(
        _prompt_soup_kernel,
        out_shape=jax.ShapeDtypeStruct((n, d), base.dtype),
        grid=grid,
        in_specs=[spec, spec],
        out_specs=spec,
        compiler_params=pltpu.CompilerParams(
            dimension_semantics=("parallel",),            # rows are independent; shardable
            vmem_limit_bytes=_VMEM_LIMIT_BYTES,
        ),
        cost_estimate=pl.CostEstimate(
            flops=3 * n * d,
            transcendentals=n,
            bytes_accessed=3 * n * d * itemsize,
        ),
    )(base, delta)


def build_synthetic_base(key, num_classes, num_templates, embed_dim):
    """Deterministic stand-in for the CLIP text-embedding averaging in __init__."""
    emb = jax.random.normal(key, (num_classes, num_templates, embed_dim), jnp.float32)
    emb = emb / jnp.linalg.norm(emb, axis=-1, keepdims=True)
    return jnp.mean(emb, axis=1)  # [num_classes, embed_dim]


def _reference(base, delta):
    w = base + delta
    return w / jnp.linalg.norm(w, axis=1, keepdims=True)


if __name__ == "__main__":
    embed_dim = 512            # CLIP ViT-B/32 text embedding dim
    num_templates = 5          # e.g. the 'inat2021_mini' template set

    key = jax.random.PRNGKey(0)
    k_base, k_delta, k_base2, k_delta2 = jax.random.split(key, 4)

    # Case 1: module-typical small class count -> tiny-input short-circuit (fused XLA).
    num_classes = 16
    base = build_synthetic_base(k_base, num_classes, num_templates, embed_dim)
    delta = 0.01 * jax.random.normal(k_delta, (num_classes, embed_dim), jnp.float32)
    out = jax.block_until_ready(prompt_soup_forward(base, delta))
    ref = _reference(base, delta)
    assert out.shape == (num_classes, embed_dim)
    assert jnp.allclose(out, ref, atol=1e-5, rtol=1e-5), "mismatch vs reference (small)"

    # Case 2: ImageNet-like class count (NOT a multiple of 8) -> tiled Pallas path
    # with cdiv grid + masked ragged tail; 2 grid steps so both v7x TCs get work.
    num_classes_big = 1000
    base2 = jax.random.normal(k_base2, (num_classes_big, embed_dim), jnp.float32)
    delta2 = 0.01 * jax.random.normal(k_delta2, (num_classes_big, embed_dim), jnp.float32)
    out2 = jax.block_until_ready(prompt_soup_forward(base2, delta2))
    ref2 = _reference(base2, delta2)
    assert out2.shape == (num_classes_big, embed_dim)
    assert jnp.allclose(out2, ref2, atol=1e-5, rtol=1e-5), "mismatch vs reference (tiled)"

    print("KERNEL_OK")
</pallas_src>

<mosaic_0001>
module attributes {stable_mosaic.version = 11 : i64} {
  func.func @_prompt_soup_kernel(%arg0: i32, %arg1: memref<504x512xf32, #tpu.memory_space<vmem>>, %arg2: memref<504x512xf32, #tpu.memory_space<vmem>>, %arg3: memref<504x512xf32, #tpu.memory_space<vmem>>) attributes {dimension_semantics = [#tpu.dimension_semantics<parallel>], iteration_bounds = array<i64: 2>, scalar_prefetch = 0 : i64, scratch_operands = 0 : i64, tpu.core_type = #tpu.core_type<tc>, window_params = [{transform_indices = @transform_0, window_bounds = array<i64: 504, 512>}, {transform_indices = @transform_1, window_bounds = array<i64: 504, 512>}, {transform_indices = @transform_2, window_bounds = array<i64: 504, 512>}]} {
    %c0 = arith.constant 0 : index
    %c0_0 = arith.constant 0 : index
    %0 = vector.load %arg1[%c0, %c0_0] : memref<504x512xf32, #tpu.memory_space<vmem>>, vector<504x512xf32>
    %c0_1 = arith.constant 0 : index
    %c0_2 = arith.constant 0 : index
    %1 = vector.load %arg2[%c0_1, %c0_2] : memref<504x512xf32, #tpu.memory_space<vmem>>, vector<504x512xf32>
    %2 = arith.addf %0, %1 : vector<504x512xf32>
    %3 = arith.mulf %2, %2 : vector<504x512xf32>
    %cst = arith.constant dense<0.000000e+00> : vector<504xf32>
    %4 = vector.multi_reduction <add>, %3, %cst [1] : vector<504x512xf32> to vector<504xf32>
    %5 = vector.shape_cast %4 : vector<504xf32> to vector<504x1xf32>
    %6 = math.rsqrt %5 : vector<504x1xf32>
    %7 = vector.broadcast %6 : vector<504x1xf32> to vector<504x512xf32>
    %8 = arith.mulf %2, %7 : vector<504x512xf32>
    %c0_3 = arith.constant 0 : index
    %c0_4 = arith.constant 0 : index
    %9 = vector.load %arg3[%c0_3, %c0_4] : memref<504x512xf32, #tpu.memory_space<vmem>>, vector<504x512xf32>
    tpu.vector_store %arg3[%c0_3, %c0_4], %8 {strides = array<i32>} : memref<504x512xf32, #tpu.memory_space<vmem>>, vector<504x512xf32>,
    return
  }
  func.func @transform_0(%arg0: i32) -> (i32, i32) {
    %c0_i32 = arith.constant 0 : i32
    %c0_i32_0 = arith.constant 0 : i32
    return %arg0, %c0_i32 : i32, i32
  }
  func.func @transform_1(%arg0: i32) -> (i32, i32) {
    %c0_i32 = arith.constant 0 : i32
    %c0_i32_0 = arith.constant 0 : i32
    return %arg0, %c0_i32 : i32, i32
  }
  func.func @transform_2(%arg0: i32) -> (i32, i32) {
    %c0_i32 = arith.constant 0 : i32
    %c0_i32_0 = arith.constant 0 : i32
    return %arg0, %c0_i32 : i32, i32
  }
}

</mosaic_0001>

<llo_original>
// kernel: tpu_custom_call.1
$region0: #{tpu_custom_call.1}
  #allocation0 [shape = 'u32[]', space=smem, size = 0x4, offset = 0x4, fixed_abs, tag = 'smem constant byte address 0x4 - core index']
  #allocation1 [shape = 'u32[144,128]{1,0:T(1,128)}', space=vmem, size = 0x12000, scoped, tag = 'internal scratch']
  %s0 = inlined_call_operand.hbm [shape: f32[1000,512], index: 0, kind: input, shape index: {}]
  %s1 = inlined_call_operand.hbm [shape: f32[1000,512], index: 1, kind: input, shape index: {}]
  %s2 = inlined_call_operand.hbm [shape: f32[1000,512], index: 2, kind: output, shape index: {}]
  %s3 = sld [smem:[#allocation0]]
  $region49: #{tpu_custom_call.1} parent=0
    _
  %s5 = ssub.s32 1, %s3
  %s6 = scalar_select 0, %s5, %s3
  $region1: #{tpu_custom_call.1} parent=0
    #allocation2 [shape = 'u8[2064384]{0}', space=vmem, size = 0x1f8000, scoped, tag = 'input window, operand 0']
    #allocation3 [shape = 's32[2]{0}', space=sflag, size = 0x8, scoped, tag = 'scoped memory for tpu_custom_call.1']
    #allocation4 [shape = 's32[2]{0}', space=sflag, size = 0x8, scoped, tag = 'scoped memory for tpu_custom_call.1']
    #allocation5 [shape = 'u8[2064384]{0}', space=vmem, size = 0x1f8000, scoped, tag = 'input window, operand 1']
    #allocation6 [shape = 's32[2]{0}', space=sflag, size = 0x8, scoped, tag = 'scoped memory for tpu_custom_call.1']
    #allocation7 [shape = 'u8[2064384]{0}', space=vmem, size = 0x1f8000, scoped, tag = 'output window, operand 0']
    %7 = vsyncpa [#allocation3], 0
    %s8 = scalar_lea.sflag [#allocation3], 1
    %9 = vsyncpa %s8, 0
    %10 = vsyncpa [#allocation6], 0
    %s11 = scalar_lea.sflag [#allocation6], 1
    %12 = vsyncpa %s11, 0
    %13 = vsyncpa [#allocation4], 0
    %s14 = scalar_lea.sflag [#allocation4], 1
    %15 = vsyncpa %s14, 0
    loop: start=0, step=1, limit=4
    $region2: #{tpu_custom_call.1} parent=1 // loop_pre_header
      _
    $region3: #{tpu_custom_call.1} parent=1 // loop_header
      %s17 = sphi 0, %s21
      %p18 = scmp.ge.s32.totalorder %s17, 4
      %s27 = sphi 0, %s29
      %s30 = sphi 0, %s27
      %s31 = sphi 0, %s30
      %s47 = sphi 0, %s31
      %s53 = sphi 0, %s55
      %s56 = sphi 0, %s53
      %s57 = sphi 0, %s56
      %s73 = sphi 0, %s57
      %s79 = sphi 0, %s81
      %s82 = sphi 0, %s79
      %s83 = sphi 0, %s82
      %s99 = sphi 0, %s83
    $region4: #{tpu_custom_call.1} parent=1 // loop_header_branch
      %20 = sbr.rel (%p18) target = $region8
    $region5: #{tpu_custom_call.1} parent=1 // loop_body
      %s22 = ssub.s32 %s17, 1
      %s23 = ssub.s32 %s17, 2
      %s24 = sadd.s32 %s17, 1
      %s25 = ssub.s32 %s17, %s24
      %p26 = scmp.eq.s32.totalorder %s25, 0
      %s28 = sadd.s32 %s27, 1
      %s29 = scalar_select %p26, %s27, %s28
      %p32 = pneg %p26
      %p33 = scmp.eq.s32.totalorder %s17, 1
      %p34 = por %p32, %p33
      %p35 = scmp.ne.s32.totalorder %s27, %s30
      %p36 = scmp.eq.s32.totalorder %s17, 0
      %p37 = por %p35, %p36
      %p38 = scmp.ne.s32.totalorder %s27, %s30
      %p39 = scmp.eq.s32.totalorder %s22, 1
      %p40 = por %p38, %p39
      %p41 = scmp.ne.s32.totalorder %s30, %s31
      %p42 = scmp.eq.s32.totalorder %s22, 0
      %p43 = por %p41, %p42
      %p44 = scmp.ne.s32.totalorder %s30, %s31
      %p45 = scmp.eq.s32.totalorder %s23, 1
      %p46 = por %p44, %p45
      %p48 = scmp.ne.s32.totalorder %s31, %s47
      %p49 = scmp.eq.s32.totalorder %s23, 0
      %p50 = por %p48, %p49
      %s51 = ssub.s32 %s17, %s24
      %p52 = scmp.eq.s32.totalorder %s51, 0
      %s54 = sadd.s32 %s53, 1
      %s55 = scalar_select %p52, %s53, %s54
      %p58 = pneg %p52
      %p59 = scmp.eq.s32.totalorder %s17, 1
      %p60 = por %p58, %p59
      %p61 = scmp.ne.s32.totalorder %s53, %s56
      %p62 = scmp.eq.s32.totalorder %s17, 0
      %p63 = por %p61, %p62
      %p64 = scmp.ne.s32.totalorder %s53, %s56
      %p65 = scmp.eq.s32.totalorder %s22, 1
      %p66 = por %p64, %p65
      %p67 = scmp.ne.s32.totalorder %s56, %s57
      %p68 = scmp.eq.s32.totalorder %s22, 0
      %p69 = por %p67, %p68
      %p70 = scmp.ne.s32.totalorder %s56, %s57
      %p71 = scmp.eq.s32.totalorder %s23, 1
      %p72 = por %p70, %p71
      %p74 = scmp.ne.s32.totalorder %s57, %s73
      %p75 = scmp.eq.s32.totalorder %s23, 0
      %p76 = por %p74, %p75
      %s77 = ssub.s32 %s17, %s24
      %p78 = scmp.eq.s32.totalorder %s77, 0
      %s80 = sadd.s32 %s79, 1
      %s81 = scalar_select %p78, %s79, %s80
      %p84 = pneg %p78
      %p85 = scmp.eq.s32.totalorder %s17, 1
      %p86 = por %p84, %p85
      %p87 = scmp.ne.s32.totalorder %s79, %s82
      %p88 = scmp.eq.s32.totalorder %s17, 0
      %p89 = por %p87, %p88
      %p90 = scmp.ne.s32.totalorder %s79, %s82
      %p91 = scmp.eq.s32.totalorder %s22, 1
      %p92 = por %p90, %p91
      %p93 = scmp.ne.s32.totalorder %s82, %s83
      %p94 = scmp.eq.s32.totalorder %s22, 0
      %p95 = por %p93, %p94
      %p96 = scmp.ne.s32.totalorder %s82, %s83
      %p97 = scmp.eq.s32.totalorder %s23, 1
      %p98 = por %p96, %p97
      %p100 = scmp.ne.s32.totalorder %s83, %s99
      %p101 = scmp.eq.s32.totalorder %s23, 0
      %p102 = por %p100, %p101
      %p103 = scmp.le.s32.totalorder 1, %s17
      %p104 = scmp.lt.s32.totalorder %s17, 3
      %p105 = pnand %p103, %p104
      %p106 = pneg %p105
      // Predicated region
      $region9: #{tpu_custom_call.1} parent=5 // pred_check
        _
      $region10: #{tpu_custom_call.1} parent=5 // pred_check_branch
        %108 = sbr.rel (%p105) target = $region12
      $region11: #{tpu_custom_call.1} parent=5 // pred_region
        %s109 = ssub.s32 %s17, 1
      $region12: #{tpu_custom_call.1} parent=5 // pred_fallthru
        _
      %p110 = scmp.lt.s32.totalorder %s17, 2
      // Predicated region
      $region13: #{tpu_custom_call.1} parent=5 // pred_check
        %p111 = pneg %p110
      $region14: #{tpu_custom_call.1} parent=5 // pred_check_branch
        %113 = sbr.rel (%p111) target = $region16
      $region15: #{tpu_custom_call.1} parent=5 // pred_region
        // Predicated region
        $region17: #{tpu_custom_call.1} parent=15 // pred_check
          %p114 = pneg %p37
        $region18: #{tpu_custom_call.1} parent=15 // pred_check_branch
          %116 = sbr.rel (%p114) target = $region20
        $region19: #{tpu_custom_call.1} parent=15 // pred_region
          %s117 = sand.u32 %s27, 1
          %s118 = scalar_lea.sflag [#allocation3], %s117
          %s119 = sand.u32 %s27, 1
          %s120 = smul.addr %s119, 2016
          %s121 = scalar_lea.vmem [#allocation2], %s120
          %s122 = smul.u32 63, %s17
          %s123 = ssub.s32 125, %s122
          %p124 = scmp.lt.s32.totalorder %s123, 63
          %s125 = scalar_select %p124, %s123, 63
          %s126 = smul.u32 128, %s125
          %s127 = smul.u32 %s126, 4
          %s129 = ssub.s32 32256, %s127
          %130 = vsyncadd %s118, %s129
          %p131 = scmp.ne.s32.totalorder 0, %s127
          %s132 = smul.addr %s122, 4
          %s133 = smul.addr %s132, 128
          %s134 = scalar_lea.hbm %s0, %s133
          %s135 = smul.u32 32, %s125
          %s136 = sshll.u32 %s121, 4
          %s137 = int_to_ptr.vmem [resolvable:$true] %s136
          %s138 = sshll.u32 %s135, 4
          %142 = dma.hbm_to_vmem [thread:$0]  (%p131), %s134, %s138, %s137, %s118, 512, 512, 32
        $region20: #{tpu_custom_call.1} parent=15 // pred_fallthru
          _
        // Predicated region
        $region21: #{tpu_custom_call.1} parent=15 // pred_check
          %p143 = pneg %p63
        $region22: #{tpu_custom_call.1} parent=15 // pred_check_branch
          %145 = sbr.rel (%p143) target = $region24
        $region23: #{tpu_custom_call.1} parent=15 // pred_region
          %s146 = sand.u32 %s53, 1
          %s147 = scalar_lea.sflag [#allocation6], %s146
          %s148 = sand.u32 %s53, 1
          %s149 = smul.addr %s148, 2016
          %s150 = scalar_lea.vmem [#allocation5], %s149
          %s151 = smul.u32 63, %s17
          %s152 = ssub.s32 125, %s151
          %p153 = scmp.lt.s32.totalorder %s152, 63
          %s154 = scalar_select %p153, %s152, 63
          %s155 = smul.u32 128, %s154
          %s156 = smul.u32 %s155, 4
          %s158 = ssub.s32 32256, %s156
          %159 = vsyncadd %s147, %s158
          %p160 = scmp.ne.s32.totalorder 0, %s156
          %s161 = smul.addr %s151, 4
          %s162 = smul.addr %s161, 128
          %s163 = scalar_lea.hbm %s1, %s162
          %s164 = smul.u32 32, %s154
          %s165 = sshll.u32 %s150, 4
          %s166 = int_to_ptr.vmem [resolvable:$true] %s165
          %s167 = sshll.u32 %s164, 4
          %171 = dma.hbm_to_vmem [thread:$0]  (%p160), %s163, %s167, %s166, %s147, 512, 512, 32
        $region24: #{tpu_custom_call.1} parent=15 // pred_fallthru
          _
      $region16: #{tpu_custom_call.1} parent=5 // pred_fallthru
        _
      %p172 = scmp.le.s32.totalorder 1, %s17
      %p173 = scmp.lt.s32.totalorder %s17, 3
      %p174 = pnand %p172, %p173
      %p175 = pneg %p174
      // Predicated region
      $region25: #{tpu_custom_call.1} parent=5 // pred_check
        _
      $region26: #{tpu_custom_call.1} parent=5 // pred_check_branch
        %177 = sbr.rel (%p174) target = $region28
      $region27: #{tpu_custom_call.1} parent=5 // pred_region
        %s178 = ssub.s32 %s17, 1
        %s179 = sand.u32 %s30, 1
        %s180 = scalar_lea.sflag [#allocation3], %s179
        %s181 = sand.u32 %s30, 1
        %s182 = smul.addr %s181, 2016
        %s183 = scalar_lea.vmem [#allocation2], %s182
        // Predicated region
        $region29: #{tpu_custom_call.1} parent=27 // pred_check
          %p184 = pneg %p43
        $region30: #{tpu_custom_call.1} parent=27 // pred_check_branch
          %186 = sbr.rel (%p184) target = $region32
        $region31: #{tpu_custom_call.1} parent=27 // pred_region
          %187 = dma.done %s180, 32256
        $region32: #{tpu_custom_call.1} parent=27 // pred_fallthru
          _
        %s188 = sand.u32 %s56, 1
        %s189 = scalar_lea.sflag [#allocation6], %s188
        %s190 = sand.u32 %s56, 1
        %s191 = smul.addr %s190, 2016
        %s192 = scalar_lea.vmem [#allocation5], %s191
        // Predicated region
        $region33: #{tpu_custom_call.1} parent=27 // pred_check
          %p193 = pneg %p69
        $region34: #{tpu_custom_call.1} parent=27 // pred_check_branch
          %195 = sbr.rel (%p193) target = $region36
        $region35: #{tpu_custom_call.1} parent=27 // pred_region
          %196 = dma.done %s189, 32256
        $region36: #{tpu_custom_call.1} parent=27 // pred_fallthru
          _
        %s197 = sand.u32 %s30, 1
        %s198 = scalar_lea.sflag [#allocation3], %s197
        %s199 = sand.u32 %s30, 1
        %s200 = smul.addr %s199, 2016
        %s201 = scalar_lea.vmem [#allocation2], %s200
        %p202 = pneg %p43
        %p203 = pneg %p40
        %s204 = sand.u32 %s56, 1
        %s205 = scalar_lea.sflag [#allocation6], %s204
        %s206 = sand.u32 %s56, 1
        %s207 = smul.addr %s206, 2016
        %s208 = scalar_lea.vmem [#allocation5], %s207
        %p209 = pneg %p69
        %p210 = pneg %p66
        %p211 = pneg %p95
        %p212 = pneg %p92
        %s213 = sand.u32 %s82, 1
        %s214 = scalar_lea.sflag [#allocation4], %s213
        %s215 = sand.u32 %s82, 1
        %s216 = smul.addr %s215, 2016
        %s217 = scalar_lea.vmem [#allocation7], %s216
        %s218 = smul.u32 63, %s22
        %s219 = ssub.s32 125, %s218
        %p220 = scmp.lt.s32.totalorder %s219, 63
        %s221 = scalar_select %p220, %s219, 63
        %s222 = smul.u32 128, %s221
        %s223 = smul.u32 %s222, 4
        %s224 = smul.u32 63, %s22
        %s225 = ssub.s32 125, %s224
        %p226 = scmp.lt.s32.totalorder %s225, 63
        %s227 = scalar_select %p226, %s225, 63
        %s228 = smul.u32 128, %s227
        %s229 = smul.u32 %s228, 4
        %s230 = smul.u32 63, %s22
        %s231 = ssub.s32 125, %s230
        %p232 = scmp.lt.s32.totalorder %s231, 63
        %s233 = scalar_select %p232, %s231, 63
        %s234 = smul.u32 128, %s233
        %s235 = smul.u32 %s234, 4
        %v236 = vld [vmem:[%s183] sm:$0xff]
        %v237 = vld [vmem:[%s183 + $0x8] sm:$0xff]
        %v238 = vld [vmem:[%s183 + $0x10] sm:$0xff]
        %v239 = vld [vmem:[%s183 + $0x18] sm:$0xff]
        %v240 = vld [vmem:[%s183 + $0x20] sm:$0xff]
        %v241 = vld [vmem:[%s183 + $0x28] sm:$0xff]
        %v242 = vld [vmem:[%s183 + $0x30] sm:$0xff]
        %v243 = vld [vmem:[%s183 + $0x38] sm:$0xff]
        %v244 = vld [vmem:[%s183 + $0x40] sm:$0xff]
        %v245 = vld [vmem:[%s183 + $0x48] sm:$0xff]
        %v246 = vld [vmem:[%s183 + $0x50] sm:$0xff]
        %v247 = vld [vmem:[%s183 + $0x58] sm:$0xff]
        %v248 = vld [vmem:[%s183 + $0x60] sm:$0xff]
        %v249 = vld [vmem:[%s183 + $0x68] sm:$0xff]
        %v250 = vld [vmem:[%s183 + $0x70] sm:$0xff]
        %v251 = vld [vmem:[%s183 + $0x78] sm:$0xff]
        %v252 = vld [vmem:[%s183 + $0x80] sm:$0xff]
        %v253 = vld [vmem:[%s183 + $0x88] sm:$0xff]
        %v254 = vld [vmem:[%s183 + $0x90] sm:$0xff]
        %v255 = vld [vmem:[%s183 + $0x98] sm:$0xff]
        %v256 = vld [vmem:[%s183 + $0xa0] sm:$0xff]
        %v257 = vld [vmem:[%s183 + $0xa8] sm:$0xff]
        %v258 = vld [vmem:[%s183 + $0xb0] sm:$0xff]
        %v259 = vld [vmem:[%s183 + $0xb8] sm:$0xff]
        %v260 = vld [vmem:[%s183 + $0xc0] sm:$0xff]
        %v261 = vld [vmem:[%s183 + $0xc8] sm:$0xff]
        %v262 = vld [vmem:[%s183 + $0xd0] sm:$0xff]
        %v263 = vld [vmem:[%s183 + $0xd8] sm:$0xff]
        %v264 = vld [vmem:[%s183 + $0xe0] sm:$0xff]
        %v265 = vld [vmem:[%s183 + $0xe8] sm:$0xff]
        %v266 = vld [vmem:[%s183 + $0xf0] sm:$0xff]
        %v267 = vld [vmem:[%s183 + $0xf8] sm:$0xff]
        %v268 = vld [vmem:[%s183 + $0x100] sm:$0xff]
        %v269 = vld [vmem:[%s183 + $0x108] sm:$0xff]
        %v270 = vld [vmem:[%s183 + $0x110] sm:$0xff]
        %v271 = vld [vmem:[%s183 + $0x118] sm:$0xff]
        %v272 = vld [vmem:[%s183 + $0x120] sm:$0xff]
        %v273 = vld [vmem:[%s183 + $0x128] sm:$0xff]
        %v274 = vld [vmem:[%s183 + $0x130] sm:$0xff]
        %v275 = vld [vmem:[%s183 + $0x138] sm:$0xff]
        %v276 = vld [vmem:[%s183 + $0x140] sm:$0xff]
        %v277 = vld [vmem:[%s183 + $0x148] sm:$0xff]
        %v278 = vld [vmem:[%s183 + $0x150] sm:$0xff]
        %v279 = vld [vmem:[%s183 + $0x158] sm:$0xff]
        %v280 = vld [vmem:[%s183 + $0x160] sm:$0xff]
        %v281 = vld [vmem:[%s183 + $0x168] sm:$0xff]
        %v282 = vld [vmem:[%s183 + $0x170] sm:$0xff]
        %v283 = vld [vmem:[%s183 + $0x178] sm:$0xff]
        %v284 = vld [vmem:[%s183 + $0x180] sm:$0xff]
        %v285 = vld [vmem:[%s183 + $0x188] sm:$0xff]
        %v286 = vld [vmem:[%s183 + $0x190] sm:$0xff]
        %v287 = vld [vmem:[%s183 + $0x198] sm:$0xff]
        %v288 = vld [vmem:[%s183 + $0x1a0] sm:$0xff]
        %v289 = vld [vmem:[%s183 + $0x1a8] sm:$0xff]
        %v290 = vld [vmem:[%s183 + $0x1b0] sm:$0xff]
        %v291 = vld [vmem:[%s183 + $0x1b8] sm:$0xff]
        %v292 = vld [vmem:[%s183 + $0x1c0] sm:$0xff]
        %v293 = vld [vmem:[%s183 + $0x1c8] sm:$0xff]
        %v294 = vld [vmem:[%s183 + $0x1d0] sm:$0xff]
        %v295 = vld [vmem:[%s183 + $0x1d8] sm:$0xff]
        %v296 = vld [vmem:[%s183 + $0x1e0] sm:$0xff]
        %v297 = vld [vmem:[%s183 + $0x1e8] sm:$0xff]
        %v298 = vld [vmem:[%s183 + $0x1f0] sm:$0xff]
        %v299 = vld [vmem:[%s183 + $0x1f8] sm:$0xff]
        %v300 = vld [vmem:[%s183 + $0x200] sm:$0xff]
        %v301 = vld [vmem:[%s183 + $0x208] sm:$0xff]
        %v302 = vld [vmem:[%s183 + $0x210] sm:$0xff]
        %v303 = vld [vmem:[%s183 + $0x218] sm:$0xff]
        %v304 = vld [vmem:[%s183 + $0x220] sm:$0xff]
        %v305 = vld [vmem:[%s183 + $0x228] sm:$0xff]
        %v306 = vld [vmem:[%s183 + $0x230] sm:$0xff]
        %v307 = vld [vmem:[%s183 + $0x238] sm:$0xff]
        %v308 = vld [vmem:[%s183 + $0x240] sm:$0xff]
        %v309 = vld [vmem:[%s183 + $0x248] sm:$0xff]
        %v310 = vld [vmem:[%s183 + $0x250] sm:$0xff]
        %v311 = vld [vmem:[%s183 + $0x258] sm:$0xff]
        %v312 = vld [vmem:[%s183 + $0x260] sm:$0xff]
        %v313 = vld [vmem:[%s183 + $0x268] sm:$0xff]
        %v314 = vld [vmem:[%s183 + $0x270] sm:$0xff]
        %v315 = vld [vmem:[%s183 + $0x278] sm:$0xff]
        %v316 = vld [vmem:[%s183 + $0x280] sm:$0xff]
        %v317 = vld [vmem:[%s183 + $0x288] sm:$0xff]
        %v318 = vld [vmem:[%s183 + $0x290] sm:$0xff]
        %v319 = vld [vmem:[%s183 + $0x298] sm:$0xff]
        %v320 = vld [vmem:[%s183 + $0x2a0] sm:$0xff]
        %v321 = vld [vmem:[%s183 + $0x2a8] sm:$0xff]
        %v322 = vld [vmem:[%s183 + $0x2b0] sm:$0xff]
        %v323 = vld [vmem:[%s183 + $0x2b8] sm:$0xff]
        %v324 = vld [vmem:[%s183 + $0x2c0] sm:$0xff]
        %v325 = vld [vmem:[%s183 + $0x2c8] sm:$0xff]
        %v326 = vld [vmem:[%s183 + $0x2d0] sm:$0xff]
        %v327 = vld [vmem:[%s183 + $0x2d8] sm:$0xff]
        %v328 = vld [vmem:[%s183 + $0x2e0] sm:$0xff]
        %v329 = vld [vmem:[%s183 + $0x2e8] sm:$0xff]
        %v330 = vld [vmem:[%s183 + $0x2f0] sm:$0xff]
        %v331 = vld [vmem:[%s183 + $0x2f8] sm:$0xff]
        %v332 = vld [vmem:[%s183 + $0x300] sm:$0xff]
        %v333 = vld [vmem:[%s183 + $0x308] sm:$0xff]
        %v334 = vld [vmem:[%s183 + $0x310] sm:$0xff]
        %v335 = vld [vmem:[%s183 + $0x318] sm:$0xff]
        %v336 = vld [vmem:[%s183 + $0x320] sm:$0xff]
        %v337 = vld [vmem:[%s183 + $0x328] sm:$0xff]
        %v338 = vld [vmem:[%s183 + $0x330] sm:$0xff]
        %v339 = vld [vmem:[%s183 + $0x338] sm:$0xff]
        %v340 = vld [vmem:[%s183 + $0x340] sm:$0xff]
        %v341 = vld [vmem:[%s183 + $0x348] sm:$0xff]
        %v342 = vld [vmem:[%s183 + $0x350] sm:$0xff]
        %v343 = vld [vmem:[%s183 + $0x358] sm:$0xff]
        %v344 = vld [vmem:[%s183 + $0x360] sm:$0xff]
        %v345 = vld [vmem:[%s183 + $0x368] sm:$0xff]
        %v346 = vld [vmem:[%s183 + $0x370] sm:$0xff]
        %v347 = vld [vmem:[%s183 + $0x378] sm:$0xff]
        %v348 = vld [vmem:[%s183 + $0x380] sm:$0xff]
        %v349 = vld [vmem:[%s183 + $0x388] sm:$0xff]
        %v350 = vld [vmem:[%s183 + $0x390] sm:$0xff]
        %v351 = vld [vmem:[%s183 + $0x398] sm:$0xff]
        %v352 = vld [vmem:[%s183 + $0x3a0] sm:$0xff]
        %v353 = vld [vmem:[%s183 + $0x3a8] sm:$0xff]
        %v354 = vld [vmem:[%s183 + $0x3b0] sm:$0xff]
        %v355 = vld [vmem:[%s183 + $0x3b8] sm:$0xff]
        %v356 = vld [vmem:[%s183 + $0x3c0] sm:$0xff]
        %v357 = vld [vmem:[%s183 + $0x3c8] sm:$0xff]
        %v358 = vld [vmem:[%s183 + $0x3d0] sm:$0xff]
        %v359 = vld [vmem:[%s183 + $0x3d8] sm:$0xff]
        %v360 = vld [vmem:[%s183 + $0x3e0] sm:$0xff]
        %v361 = vld [vmem:[%s183 + $0x3e8] sm:$0xff]
        %v362 = vld [vmem:[%s183 + $0x3f0] sm:$0xff]
        %v363 = vld [vmem:[%s183 + $0x3f8] sm:$0xff]
        %v364 = vld [vmem:[%s183 + $0x400] sm:$0xff]
        %v365 = vld [vmem:[%s183 + $0x408] sm:$0xff]
        %v366 = vld [vmem:[%s183 + $0x410] sm:$0xff]
        %v367 = vld [vmem:[%s183 + $0x418] sm:$0xff]
        %v368 = vld [vmem:[%s183 + $0x420] sm:$0xff]
        %v369 = vld [vmem:[%s183 + $0x428] sm:$0xff]
        %v370 = vld [vmem:[%s183 + $0x430] sm:$0xff]
        %v371 = vld [vmem:[%s183 + $0x438] sm:$0xff]
        %v372 = vld [vmem:[%s183 + $0x440] sm:$0xff]
        %v373 = vld [vmem:[%s183 + $0x448] sm:$0xff]
        %v374 = vld [vmem:[%s183 + $0x450] sm:$0xff]
        %v375 = vld [vmem:[%s183 + $0x458] sm:$0xff]
        %v376 = vld [vmem:[%s183 + $0x460] sm:$0xff]
        %v377 = vld [vmem:[%s183 + $0x468] sm:$0xff]
        %v378 = vld [vmem:[%s183 + $0x470] sm:$0xff]
        %v379 = vld [vmem:[%s183 + $0x478] sm:$0xff]
        %v380 = vld [vmem:[%s183 + $0x480] sm:$0xff]
        %v381 = vld [vmem:[%s183 + $0x488] sm:$0xff]
        %v382 = vld [vmem:[%s183 + $0x490] sm:$0xff]
        %v383 = vld [vmem:[%s183 + $0x498] sm:$0xff]
        %v384 = vld [vmem:[%s183 + $0x4a0] sm:$0xff]
        %v385 = vld [vmem:[%s183 + $0x4a8] sm:$0xff]
        %v386 = vld [vmem:[%s183 + $0x4b0] sm:$0xff]
        %v387 = vld [vmem:[%s183 + $0x4b8] sm:$0xff]
        %v388 = vld [vmem:[%s183 + $0x4c0] sm:$0xff]
        %v389 = vld [vmem:[%s183 + $0x4c8] sm:$0xff]
        %v390 = vld [vmem:[%s183 + $0x4d0] sm:$0xff]
        %v391 = vld [vmem:[%s183 + $0x4d8] sm:$0xff]
        %v392 = vld [vmem:[%s183 + $0x4e0] sm:$0xff]
        %v393 = vld [vmem:[%s183 + $0x4e8] sm:$0xff]
        %v394 = vld [vmem:[%s183 + $0x4f0] sm:$0xff]
        %v395 = vld [vmem:[%s183 + $0x4f8] sm:$0xff]
        %v396 = vld [vmem:[%s183 + $0x500] sm:$0xff]
        %v397 = vld [vmem:[%s183 + $0x508] sm:$0xff]
        %v398 = vld [vmem:[%s183 + $0x510] sm:$0xff]
        %v399 = vld [vmem:[%s183 + $0x518] sm:$0xff]
        %v400 = vld [vmem:[%s183 + $0x520] sm:$0xff]
        %v401 = vld [vmem:[%s183 + $0x528] sm:$0xff]
        %v402 = vld [vmem:[%s183 + $0x530] sm:$0xff]
        %v403 = vld [vmem:[%s183 + $0x538] sm:$0xff]
        %v404 = vld [vmem:[%s183 + $0x540] sm:$0xff]
        %v405 = vld [vmem:[%s183 + $0x548] sm:$0xff]
        %v406 = vld [vmem:[%s183 + $0x550] sm:$0xff]
        %v407 = vld [vmem:[%s183 + $0x558] sm:$0xff]
        %v408 = vld [vmem:[%s183 + $0x560] sm:$0xff]
        %v409 = vld [vmem:[%s183 + $0x568] sm:$0xff]
        %v410 = vld [vmem:[%s183 + $0x570] sm:$0xff]
        %v411 = vld [vmem:[%s183 + $0x578] sm:$0xff]
        %v412 = vld [vmem:[%s183 + $0x580] sm:$0xff]
        %v413 = vld [vmem:[%s183 + $0x588] sm:$0xff]
        %v414 = vld [vmem:[%s183 + $0x590] sm:$0xff]
        %v415 = vld [vmem:[%s183 + $0x598] sm:$0xff]
        %v416 = vld [vmem:[%s183 + $0x5a0] sm:$0xff]
        %v417 = vld [vmem:[%s183 + $0x5a8] sm:$0xff]
        %v418 = vld [vmem:[%s183 + $0x5b0] sm:$0xff]
        %v419 = vld [vmem:[%s183 + $0x5b8] sm:$0xff]
        %v420 = vld [vmem:[%s183 + $0x5c0] sm:$0xff]
        %v421 = vld [vmem:[%s183 + $0x5c8] sm:$0xff]
        %v422 = vld [vmem:[%s183 + $0x5d0] sm:$0xff]
        %v423 = vld [vmem:[%s183 + $0x5d8] sm:$0xff]
        %v424 = vld [vmem:[%s183 + $0x5e0] sm:$0xff]
        %v425 = vld [vmem:[%s183 + $0x5e8] sm:$0xff]
        %v426 = vld [vmem:[%s183 + $0x5f0] sm:$0xff]
        %v427 = vld [vmem:[%s183 + $0x5f8] sm:$0xff]
        %v428 = vld [vmem:[%s183 + $0x600] sm:$0xff]
        %v429 = vld [vmem:[%s183 + $0x608] sm:$0xff]
        %v430 = vld [vmem:[%s183 + $0x610] sm:$0xff]
        %v431 = vld [vmem:[%s183 + $0x618] sm:$0xff]
        %v432 = vld [vmem:[%s183 + $0x620] sm:$0xff]
        %v433 = vld [vmem:[%s183 + $0x628] sm:$0xff]
        %v434 = vld [vmem:[%s183 + $0x630] sm:$0xff]
        %v435 = vld [vmem:[%s183 + $0x638] sm:$0xff]
        %v436 = vld [vmem:[%s183 + $0x640] sm:$0xff]
        %v437 = vld [vmem:[%s183 + $0x648] sm:$0xff]
        %v438 = vld [vmem:[%s183 + $0x650] sm:$0xff]
        %v439 = vld [vmem:[%s183 + $0x658] sm:$0xff]
        %v440 = vld [vmem:[%s183 + $0x660] sm:$0xff]
        %v441 = vld [vmem:[%s183 + $0x668] sm:$0xff]
        %v442 = vld [vmem:[%s183 + $0x670] sm:$0xff]
        %v443 = vld [vmem:[%s183 + $0x678] sm:$0xff]
        %v444 = vld [vmem:[%s183 + $0x680] sm:$0xff]
        %v445 = vld [vmem:[%s183 + $0x688] sm:$0xff]
        %v446 = vld [vmem:[%s183 + $0x690] sm:$0xff]
        %v447 = vld [vmem:[%s183 + $0x698] sm:$0xff]
        %v448 = vld [vmem:[%s183 + $0x6a0] sm:$0xff]
        %v449 = vld [vmem:[%s183 + $0x6a8] sm:$0xff]
        %v450 = vld [vmem:[%s183 + $0x6b0] sm:$0xff]
        %v451 = vld [vmem:[%s183 + $0x6b8] sm:$0xff]
        %v452 = vld [vmem:[%s183 + $0x6c0] sm:$0xff]
        %v453 = vld [vmem:[%s183 + $0x6c8] sm:$0xff]
        %v454 = vld [vmem:[%s183 + $0x6d0] sm:$0xff]
        %v455 = vld [vmem:[%s183 + $0x6d8] sm:$0xff]
        %v456 = vld [vmem:[%s183 + $0x6e0] sm:$0xff]
        %v457 = vld [vmem:[%s183 + $0x6e8] sm:$0xff]
        %v458 = vld [vmem:[%s183 + $0x6f0] sm:$0xff]
        %v459 = vld [vmem:[%s183 + $0x6f8] sm:$0xff]
        %v460 = vld [vmem:[%s183 + $0x700] sm:$0xff]
        %v461 = vld [vmem:[%s183 + $0x708] sm:$0xff]
        %v462 = vld [vmem:[%s183 + $0x710] sm:$0xff]
        %v463 = vld [vmem:[%s183 + $0x718] sm:$0xff]
        %v464 = vld [vmem:[%s183 + $0x720] sm:$0xff]
        %v465 = vld [vmem:[%s183 + $0x728] sm:$0xff]
        %v466 = vld [vmem:[%s183 + $0x730] sm:$0xff]
        %v467 = vld [vmem:[%s183 + $0x738] sm:$0xff]
        %v468 = vld [vmem:[%s183 + $0x740] sm:$0xff]
        %v469 = vld [vmem:[%s183 + $0x748] sm:$0xff]
        %v470 = vld [vmem:[%s183 + $0x750] sm:$0xff]
        %v471 = vld [vmem:[%s183 + $0x758] sm:$0xff]
        %v472 = vld [vmem:[%s183 + $0x760] sm:$0xff]
        %v473 = vld [vmem:[%s183 + $0x768] sm:$0xff]
        %v474 = vld [vmem:[%s183 + $0x770] sm:$0xff]
        %v475 = vld [vmem:[%s183 + $0x778] sm:$0xff]
        %v476 = vld [vmem:[%s183 + $0x780] sm:$0xff]
        %v477 = vld [vmem:[%s183 + $0x788] sm:$0xff]
        %v478 = vld [vmem:[%s183 + $0x790] sm:$0xff]
        %v479 = vld [vmem:[%s183 + $0x798] sm:$0xff]
        %v480 = vld [vmem:[%s183 + $0x7a0] sm:$0xff]
        %v481 = vld [vmem:[%s183 + $0x7a8] sm:$0xff]
        %v482 = vld [vmem:[%s183 + $0x7b0] sm:$0xff]
        %v483 = vld [vmem:[%s183 + $0x7b8] sm:$0xff]
        %v484 = vld [vmem:[%s183 + $0x7c0] sm:$0xff]
        %v485 = vld [vmem:[%s183 + $0x7c8] sm:$0xff]
        %v486 = vld [vmem:[%s183 + $0x7d0] sm:$0xff]
        %v487 = vld [vmem:[%s183 + $0x7d8] sm:$0xff]
        %v488 = vld [vmem:[%s192] sm:$0xff]
        %v489 = vld [vmem:[%s192 + $0x8] sm:$0xff]
        %v490 = vld [vmem:[%s192 + $0x10] sm:$0xff]
        %v491 = vld [vmem:[%s192 + $0x18] sm:$0xff]
        %v492 = vld [vmem:[%s192 + $0x20] sm:$0xff]
        %v493 = vld [vmem:[%s192 + $0x28] sm:$0xff]
        %v494 = vld [vmem:[%s192 + $0x30] sm:$0xff]
        %v495 = vld [vmem:[%s192 + $0x38] sm:$0xff]
        %v496 = vld [vmem:[%s192 + $0x40] sm:$0xff]
        %v497 = vld [vmem:[%s192 + $0x48] sm:$0xff]
        %v498 = vld [vmem:[%s192 + $0x50] sm:$0xff]
        %v499 = vld [vmem:[%s192 + $0x58] sm:$0xff]
        %v500 = vld [vmem:[%s192 + $0x60] sm:$0xff]
        %v501 = vld [vmem:[%s192 + $0x68] sm:$0xff]
        %v502 = vld [vmem:[%s192 + $0x70] sm:$0xff]
        %v503 = vld [vmem:[%s192 + $0x78] sm:$0xff]
        %v504 = vld [vmem:[%s192 + $0x80] sm:$0xff]
        %v505 = vld [vmem:[%s192 + $0x88] sm:$0xff]
        %v506 = vld [vmem:[%s192 + $0x90] sm:$0xff]
        %v507 = vld [vmem:[%s192 + $0x98] sm:$0xff]
        %v508 = vld [vmem:[%s192 + $0xa0] sm:$0xff]
        %v509 = vld [vmem:[%s192 + $0xa8] sm:$0xff]
        %v510 = vld [vmem:[%s192 + $0xb0] sm:$0xff]
        %v511 = vld [vmem:[%s192 + $0xb8] sm:$0xff]
        %v512 = vld [vmem:[%s192 + $0xc0] sm:$0xff]
        %v513 = vld [vmem:[%s192 + $0xc8] sm:$0xff]
        %v514 = vld [vmem:[%s192 + $0xd0] sm:$0xff]
        %v515 = vld [vmem:[%s192 + $0xd8] sm:$0xff]
        %v516 = vld [vmem:[%s192 + $0xe0] sm:$0xff]
        %v517 = vld [vmem:[%s192 + $0xe8] sm:$0xff]
        %v518 = vld [vmem:[%s192 + $0xf0] sm:$0xff]
        %v519 = vld [vmem:[%s192 + $0xf8] sm:$0xff]
        %v520 = vld [vmem:[%s192 + $0x100] sm:$0xff]
        %v521 = vld [vmem:[%s192 + $0x108] sm:$0xff]
        %v522 = vld [vmem:[%s192 + $0x110] sm:$0xff]
        %v523 = vld [vmem:[%s192 + $0x118] sm:$0xff]
        %v524 = vld [vmem:[%s192 + $0x120] sm:$0xff]
        %v525 = vld [vmem:[%s192 + $0x128] sm:$0xff]
        %v526 = vld [vmem:[%s192 + $0x130] sm:$0xff]
        %v527 = vld [vmem:[%s192 + $0x138] sm:$0xff]
        %v528 = vld [vmem:[%s192 + $0x140] sm:$0xff]
        %v529 = vld [vmem:[%s192 + $0x148] sm:$0xff]
        %v530 = vld [vmem:[%s192 + $0x150] sm:$0xff]
        %v531 = vld [vmem:[%s192 + $0x158] sm:$0xff]
        %v532 = vld [vmem:[%s192 + $0x160] sm:$0xff]
        %v533 = vld [vmem:[%s192 + $0x168] sm:$0xff]
        %v534 = vld [vmem:[%s192 + $0x170] sm:$0xff]
        %v535 = vld [vmem:[%s192 + $0x178] sm:$0xff]
        %v536 = vld [vmem:[%s192 + $0x180] sm:$0xff]
        %v537 = vld [vmem:[%s192 + $0x188] sm:$0xff]
        %v538 = vld [vmem:[%s192 + $0x190] sm:$0xff]
        %v539 = vld [vmem:[%s192 + $0x198] sm:$0xff]
        %v540 = vld [vmem:[%s192 + $0x1a0] sm:$0xff]
        %v541 = vld [vmem:[%s192 + $0x1a8] sm:$0xff]
        %v542 = vld [vmem:[%s192 + $0x1b0] sm:$0xff]
        %v543 = vld [vmem:[%s192 + $0x1b8] sm:$0xff]
        %v544 = vld [vmem:[%s192 + $0x1c0] sm:$0xff]
        %v545 = vld [vmem:[%s192 + $0x1c8] sm:$0xff]
        %v546 = vld [vmem:[%s192 + $0x1d0] sm:$0xff]
        %v547 = vld [vmem:[%s192 + $0x1d8] sm:$0xff]
        %v548 = vld [vmem:[%s192 + $0x1e0] sm:$0xff]
        %v549 = vld [vmem:[%s192 + $0x1e8] sm:$0xff]
        %v550 = vld [vmem:[%s192 + $0x1f0] sm:$0xff]
        %v551 = vld [vmem:[%s192 + $0x1f8] sm:$0xff]
        %v552 = vld [vmem:[%s192 + $0x200] sm:$0xff]
        %v553 = vld [vmem:[%s192 + $0x208] sm:$0xff]
        %v554 = vld [vmem:[%s192 + $0x210] sm:$0xff]
        %v555 = vld [vmem:[%s192 + $0x218] sm:$0xff]
        %v556 = vld [vmem:[%s192 + $0x220] sm:$0xff]
        %v557 = vld [vmem:[%s192 + $0x228] sm:$0xff]
        %v558 = vld [vmem:[%s192 + $0x230] sm:$0xff]
        %v559 = vld [vmem:[%s192 + $0x238] sm:$0xff]
        %v560 = vld [vmem:[%s192 + $0x240] sm:$0xff]
        %v561 = vld [vmem:[%s192 + $0x248] sm:$0xff]
        %v562 = vld [vmem:[%s192 + $0x250] sm:$0xff]
        %v563 = vld [vmem:[%s192 + $0x258] sm:$0xff]
        %v564 = vld [vmem:[%s192 + $0x260] sm:$0xff]
        %v565 = vld [vmem:[%s192 + $0x268] sm:$0xff]
        %v566 = vld [vmem:[%s192 + $0x270] sm:$0xff]
        %v567 = vld [vmem:[%s192 + $0x278] sm:$0xff]
        %v568 = vld [vmem:[%s192 + $0x280] sm:$0xff]
        %v569 = vld [vmem:[%s192 + $0x288] sm:$0xff]
        %v570 = vld [vmem:[%s192 + $0x290] sm:$0xff]
        %v571 = vld [vmem:[%s192 + $0x298] sm:$0xff]
        %v572 = vld [vmem:[%s192 + $0x2a0] sm:$0xff]
        %v573 = vld [vmem:[%s192 + $0x2a8] sm:$0xff]
        %v574 = vld [vmem:[%s192 + $0x2b0] sm:$0xff]
        %v575 = vld [vmem:[%s192 + $0x2b8] sm:$0xff]
        %v576 = vld [vmem:[%s192 + $0x2c0] sm:$0xff]
        %v577 = vld [vmem:[%s192 + $0x2c8] sm:$0xff]
        %v578 = vld [vmem:[%s192 + $0x2d0] sm:$0xff]
        %v579 = vld [vmem:[%s192 + $0x2d8] sm:$0xff]
        %v580 = vld [vmem:[%s192 + $0x2e0] sm:$0xff]
        %v581 = vld [vmem:[%s192 + $0x2e8] sm:$0xff]
        %v582 = vld [vmem:[%s192 + $0x2f0] sm:$0xff]
        %v583 = vld [vmem:[%s192 + $0x2f8] sm:$0xff]
        %v584 = vld [vmem:[%s192 + $0x300] sm:$0xff]
        %v585 = vld [vmem:[%s192 + $0x308] sm:$0xff]
        %v586 = vld [vmem:[%s192 + $0x310] sm:$0xff]
        %v587 = vld [vmem:[%s192 + $0x318] sm:$0xff]
        %v588 = vld [vmem:[%s192 + $0x320] sm:$0xff]
        %v589 = vld [vmem:[%s192 + $0x328] sm:$0xff]
        %v590 = vld [vmem:[%s192 + $0x330] sm:$0xff]
        %v591 = vld [vmem:[%s192 + $0x338] sm:$0xff]
        %v592 = vld [vmem:[%s192 + $0x340] sm:$0xff]
        %v593 = vld [vmem:[%s192 + $0x348] sm:$0xff]
        %v594 = vld [vmem:[%s192 + $0x350] sm:$0xff]
        %v595 = vld [vmem:[%s192 + $0x358] sm:$0xff]
        %v596 = vld [vmem:[%s192 + $0x360] sm:$0xff]
        %v597 = vld [vmem:[%s192 + $0x368] sm:$0xff]
        %v598 = vld [vmem:[%s192 + $0x370] sm:$0xff]
        %v599 = vld [vmem:[%s192 + $0x378] sm:$0xff]
        %v600 = vld [vmem:[%s192 + $0x380] sm:$0xff]
        %v601 = vld [vmem:[%s192 + $0x388] sm:$0xff]
        %v602 = vld [vmem:[%s192 + $0x390] sm:$0xff]
        %v603 = vld [vmem:[%s192 + $0x398] sm:$0xff]
        %v604 = vld [vmem:[%s192 + $0x3a0] sm:$0xff]
        %v605 = vld [vmem:[%s192 + $0x3a8] sm:$0xff]
        %v606 = vld [vmem:[%s192 + $0x3b0] sm:$0xff]
        %v607 = vld [vmem:[%s192 + $0x3b8] sm:$0xff]
        %v608 = vld [vmem:[%s192 + $0x3c0] sm:$0xff]
        %v609 = vld [vmem:[%s192 + $0x3c8] sm:$0xff]
        %v610 = vld [vmem:[%s192 + $0x3d0] sm:$0xff]
        %v611 = vld [vmem:[%s192 + $0x3d8] sm:$0xff]
        %v612 = vld [vmem:[%s192 + $0x3e0] sm:$0xff]
        %v613 = vld [vmem:[%s192 + $0x3e8] sm:$0xff]
        %v614 = vld [vmem:[%s192 + $0x3f0] sm:$0xff]
        %v615 = vld [vmem:[%s192 + $0x3f8] sm:$0xff]
        %v616 = vld [vmem:[%s192 + $0x400] sm:$0xff]
        %v617 = vld [vmem:[%s192 + $0x408] sm:$0xff]
        %v618 = vld [vmem:[%s192 + $0x410] sm:$0xff]
        %v619 = vld [vmem:[%s192 + $0x418] sm:$0xff]
        %v620 = vld [vmem:[%s192 + $0x420] sm:$0xff]
        %v621 = vld [vmem:[%s192 + $0x428] sm:$0xff]
        %v622 = vld [vmem:[%s192 + $0x430] sm:$0xff]
        %v623 = vld [vmem:[%s192 + $0x438] sm:$0xff]
        %v624 = vld [vmem:[%s192 + $0x440] sm:$0xff]
        %v625 = vld [vmem:[%s192 + $0x448] sm:$0xff]
        %v626 = vld [vmem:[%s192 + $0x450] sm:$0xff]
        %v627 = vld [vmem:[%s192 + $0x458] sm:$0xff]
        %v628 = vld [vmem:[%s192 + $0x460] sm:$0xff]
        %v629 = vld [vmem:[%s192 + $0x468] sm:$0xff]
        %v630 = vld [vmem:[%s192 + $0x470] sm:$0xff]
        %v631 = vld [vmem:[%s192 + $0x478] sm:$0xff]
        %v632 = vld [vmem:[%s192 + $0x480] sm:$0xff]
        %v633 = vld [vmem:[%s192 + $0x488] sm:$0xff]
        %v634 = vld [vmem:[%s192 + $0x490] sm:$0xff]
        %v635 = vld [vmem:[%s192 + $0x498] sm:$0xff]
        %v636 = vld [vmem:[%s192 + $0x4a0] sm:$0xff]
        %v637 = vld [vmem:[%s192 + $0x4a8] sm:$0xff]
        %v638 = vld [vmem:[%s192 + $0x4b0] sm:$0xff]
        %v639 = vld [vmem:[%s192 + $0x4b8] sm:$0xff]
        %v640 = vld [vmem:[%s192 + $0x4c0] sm:$0xff]
        %v641 = vld [vmem:[%s192 + $0x4c8] sm:$0xff]
        %v642 = vld [vmem:[%s192 + $0x4d0] sm:$0xff]
        %v643 = vld [vmem:[%s192 + $0x4d8] sm:$0xff]
        %v644 = vld [vmem:[%s192 + $0x4e0] sm:$0xff]
        %v645 = vld [vmem:[%s192 + $0x4e8] sm:$0xff]
        %v646 = vld [vmem:[%s192 + $0x4f0] sm:$0xff]
        %v647 = vld [vmem:[%s192 + $0x4f8] sm:$0xff]
        %v648 = vld [vmem:[%s192 + $0x500] sm:$0xff]
        %v649 = vld [vmem:[%s192 + $0x508] sm:$0xff]
        %v650 = vld [vmem:[%s192 + $0x510] sm:$0xff]
        %v651 = vld [vmem:[%s192 + $0x518] sm:$0xff]
        %v652 = vld [vmem:[%s192 + $0x520] sm:$0xff]
        %v653 = vld [vmem:[%s192 + $0x528] sm:$0xff]
        %v654 = vld [vmem:[%s192 + $0x530] sm:$0xff]
        %v655 = vld [vmem:[%s192 + $0x538] sm:$0xff]
        %v656 = vld [vmem:[%s192 + $0x540] sm:$0xff]
        %v657 = vld [vmem:[%s192 + $0x548] sm:$0xff]
        %v658 = vld [vmem:[%s192 + $0x550] sm:$0xff]
        %v659 = vld [vmem:[%s192 + $0x558] sm:$0xff]
        %v660 = vld [vmem:[%s192 + $0x560] sm:$0xff]
        %v661 = vld [vmem:[%s192 + $0x568] sm:$0xff]
        %v662 = vld [vmem:[%s192 + $0x570] sm:$0xff]
        %v663 = vld [vmem:[%s192 + $0x578] sm:$0xff]
        %v664 = vld [vmem:[%s192 + $0x580] sm:$0xff]
        %v665 = vld [vmem:[%s192 + $0x588] sm:$0xff]
        %v666 = vld [vmem:[%s192 + $0x590] sm:$0xff]
        %v667 = vld [vmem:[%s192 + $0x598] sm:$0xff]
        %v668 = vld [vmem:[%s192 + $0x5a0] sm:$0xff]
        %v669 = vld [vmem:[%s192 + $0x5a8] sm:$0xff]
        %v670 = vld [vmem:[%s192 + $0x5b0] sm:$0xff]
        %v671 = vld [vmem:[%s192 + $0x5b8] sm:$0xff]
        %v672 = vld [vmem:[%s192 + $0x5c0] sm:$0xff]
        %v673 = vld [vmem:[%s192 + $0x5c8] sm:$0xff]
        %v674 = vld [vmem:[%s192 + $0x5d0] sm:$0xff]
        %v675 = vld [vmem:[%s192 + $0x5d8] sm:$0xff]
        %v676 = vld [vmem:[%s192 + $0x5e0] sm:$0xff]
        %v677 = vld [vmem:[%s192 + $0x5e8] sm:$0xff]
        %v678 = vld [vmem:[%s192 + $0x5f0] sm:$0xff]
        %v679 = vld [vmem:[%s192 + $0x5f8] sm:$0xff]
        %v680 = vld [vmem:[%s192 + $0x600] sm:$0xff]
        %v681 = vld [vmem:[%s192 + $0x608] sm:$0xff]
        %v682 = vld [vmem:[%s192 + $0x610] sm:$0xff]
        %v683 = vld [vmem:[%s192 + $0x618] sm:$0xff]
        %v684 = vld [vmem:[%s192 + $0x620] sm:$0xff]
        %v685 = vld [vmem:[%s192 + $0x628] sm:$0xff]
        %v686 = vld [vmem:[%s192 + $0x630] sm:$0xff]
        %v687 = vld [vmem:[%s192 + $0x638] sm:$0xff]
        %v688 = vld [vmem:[%s192 + $0x640] sm:$0xff]
        %v689 = vld [vmem:[%s192 + $0x648] sm:$0xff]
        %v690 = vld [vmem:[%s192 + $0x650] sm:$0xff]
        %v691 = vld [vmem:[%s192 + $0x658] sm:$0xff]
        %v692 = vld [vmem:[%s192 + $0x660] sm:$0xff]
        %v693 = vld [vmem:[%s192 + $0x668] sm:$0xff]
        %v694 = vld [vmem:[%s192 + $0x670] sm:$0xff]
        %v695 = vld [vmem:[%s192 + $0x678] sm:$0xff]
        %v696 = vld [vmem:[%s192 + $0x680] sm:$0xff]
        %v697 = vld [vmem:[%s192 + $0x688] sm:$0xff]
        %v698 = vld [vmem:[%s192 + $0x690] sm:$0xff]
        %v699 = vld [vmem:[%s192 + $0x698] sm:$0xff]
        %v700 = vld [vmem:[%s192 + $0x6a0] sm:$0xff]
        %v701 = vld [vmem:[%s192 + $0x6a8] sm:$0xff]
        %v702 = vld [vmem:[%s192 + $0x6b0] sm:$0xff]
        %v703 = vld [vmem:[%s192 + $0x6b8] sm:$0xff]
        %v704 = vld [vmem:[%s192 + $0x6c0] sm:$0xff]
        %v705 = vld [vmem:[%s192 + $0x6c8] sm:$0xff]
        %v706 = vld [vmem:[%s192 + $0x6d0] sm:$0xff]
        %v707 = vld [vmem:[%s192 + $0x6d8] sm:$0xff]
        %v708 = vld [vmem:[%s192 + $0x6e0] sm:$0xff]
        %v709 = vld [vmem:[%s192 + $0x6e8] sm:$0xff]
        %v710 = vld [vmem:[%s192 + $0x6f0] sm:$0xff]
        %v711 = vld [vmem:[%s192 + $0x6f8] sm:$0xff]
        %v712 = vld [vmem:[%s192 + $0x700] sm:$0xff]
        %v713 = vld [vmem:[%s192 + $0x708] sm:$0xff]
        %v714 = vld [vmem:[%s192 + $0x710] sm:$0xff]
        %v715 = vld [vmem:[%s192 + $0x718] sm:$0xff]
        %v716 = vld [vmem:[%s192 + $0x720] sm:$0xff]
        %v717 = vld [vmem:[%s192 + $0x728] sm:$0xff]
        %v718 = vld [vmem:[%s192 + $0x730] sm:$0xff]
        %v719 = vld [vmem:[%s192 + $0x738] sm:$0xff]
        %v720 = vld [vmem:[%s192 + $0x740] sm:$0xff]
        %v721 = vld [vmem:[%s192 + $0x748] sm:$0xff]
        %v722 = vld [vmem:[%s192 + $0x750] sm:$0xff]
        %v723 = vld [vmem:[%s192 + $0x758] sm:$0xff]
        %v724 = vld [vmem:[%s192 + $0x760] sm:$0xff]
        %v725 = vld [vmem:[%s192 + $0x768] sm:$0xff]
        %v726 = vld [vmem:[%s192 + $0x770] sm:$0xff]
        %v727 = vld [vmem:[%s192 + $0x778] sm:$0xff]
        %v728 = vld [vmem:[%s192 + $0x780] sm:$0xff]
        %v729 = vld [vmem:[%s192 + $0x788] sm:$0xff]
        %v730 = vld [vmem:[%s192 + $0x790] sm:$0xff]
        %v731 = vld [vmem:[%s192 + $0x798] sm:$0xff]
        %v732 = vld [vmem:[%s192 + $0x7a0] sm:$0xff]
        %v733 = vld [vmem:[%s192 + $0x7a8] sm:$0xff]
        %v734 = vld [vmem:[%s192 + $0x7b0] sm:$0xff]
        %v735 = vld [vmem:[%s192 + $0x7b8] sm:$0xff]
        %v736 = vld [vmem:[%s192 + $0x7c0] sm:$0xff]
        %v737 = vld [vmem:[%s192 + $0x7c8] sm:$0xff]
        %v738 = vld [vmem:[%s192 + $0x7d0] sm:$0xff]
        %v739 = vld [vmem:[%s192 + $0x7d8] sm:$0xff]
        %v740 = vadd.f32 %v236, %v488
        %v741 = vadd.f32 %v237, %v489
        %v742 = vadd.f32 %v238, %v490
        %v743 = vadd.f32 %v239, %v491
        %v744 = vadd.f32 %v240, %v492
        %v745 = vadd.f32 %v241, %v493
        %v746 = vadd.f32 %v242, %v494
        %v747 = vadd.f32 %v243, %v495
        %v748 = vadd.f32 %v244, %v496
        %v749 = vadd.f32 %v245, %v497
        %v750 = vadd.f32 %v246, %v498
        %v751 = vadd.f32 %v247, %v499
        %v752 = vadd.f32 %v248, %v500
        %v753 = vadd.f32 %v249, %v501
        %v754 = vadd.f32 %v250, %v502
        %v755 = vadd.f32 %v251, %v503
        %v756 = vadd.f32 %v252, %v504
        %v757 = vadd.f32 %v253, %v505
        %v758 = vadd.f32 %v254, %v506
        %v759 = vadd.f32 %v255, %v507
        %v760 = vadd.f32 %v256, %v508
        %v761 = vadd.f32 %v257, %v509
        %v762 = vadd.f32 %v258, %v510
        %v763 = vadd.f32 %v259, %v511
        %v764 = vadd.f32 %v260, %v512
        %v765 = vadd.f32 %v261, %v513
        %v766 = vadd.f32 %v262, %v514
        %v767 = vadd.f32 %v263, %v515
        %v768 = vadd.f32 %v264, %v516
        %v769 = vadd.f32 %v265, %v517
        %v770 = vadd.f32 %v266, %v518
        %v771 = vadd.f32 %v267, %v519
        %v772 = vadd.f32 %v268, %v520
        %v773 = vadd.f32 %v269, %v521
        %v774 = vadd.f32 %v270, %v522
        %v775 = vadd.f32 %v271, %v523
        %v776 = vadd.f32 %v272, %v524
        %v777 = vadd.f32 %v273, %v525
        %v778 = vadd.f32 %v274, %v526
        %v779 = vadd.f32 %v275, %v527
        %v780 = vadd.f32 %v276, %v528
        %v781 = vadd.f32 %v277, %v529
        %v782 = vadd.f32 %v278, %v530
        %v783 = vadd.f32 %v279, %v531
        %v784 = vadd.f32 %v280, %v532
        %v785 = vadd.f32 %v281, %v533
        %v786 = vadd.f32 %v282, %v534
        %v787 = vadd.f32 %v283, %v535
        %v788 = vadd.f32 %v284, %v536
        %v789 = vadd.f32 %v285, %v537
        %v790 = vadd.f32 %v286, %v538
        %v791 = vadd.f32 %v287, %v539
        %v792 = vadd.f32 %v288, %v540
        %v793 = vadd.f32 %v289, %v541
        %v794 = vadd.f32 %v290, %v542
        %v795 = vadd.f32 %v291, %v543
        %v796 = vadd.f32 %v292, %v544
        %v797 = vadd.f32 %v293, %v545
        %v798 = vadd.f32 %v294, %v546
        %v799 = vadd.f32 %v295, %v547
        %v800 = vadd.f32 %v296, %v548
        %v801 = vadd.f32 %v297, %v549
        %v802 = vadd.f32 %v298, %v550
        %v803 = vadd.f32 %v299, %v551
        %v804 = vadd.f32 %v300, %v552
        %v805 = vadd.f32 %v301, %v553
        %v806 = vadd.f32 %v302, %v554
        %v807 = vadd.f32 %v303, %v555
        %v808 = vadd.f32 %v304, %v556
        %v809 = vadd.f32 %v305, %v557
        %v810 = vadd.f32 %v306, %v558
        %v811 = vadd.f32 %v307, %v559
        %v812 = vadd.f32 %v308, %v560
        %v813 = vadd.f32 %v309, %v561
        %v814 = vadd.f32 %v310, %v562
        %v815 = vadd.f32 %v311, %v563
        %v816 = vadd.f32 %v312, %v564
        %v817 = vadd.f32 %v313, %v565
        %v818 = vadd.f32 %v314, %v566
        %v819 = vadd.f32 %v315, %v567
        %v820 = vadd.f32 %v316, %v568
        %v821 = vadd.f32 %v317, %v569
        %v822 = vadd.f32 %v318, %v570
        %v823 = vadd.f32 %v319, %v571
        %v824 = vadd.f32 %v320, %v572
        %v825 = vadd.f32 %v321, %v573
        %v826 = vadd.f32 %v322, %v574
        %v827 = vadd.f32 %v323, %v575
        %v828 = vadd.f32 %v324, %v576
        %v829 = vadd.f32 %v325, %v577
        %v830 = vadd.f32 %v326, %v578
        %v831 = vadd.f32 %v327, %v579
        %v832 = vadd.f32 %v328, %v580
        %v833 = vadd.f32 %v329, %v581
        %v834 = vadd.f32 %v330, %v582
        %v835 = vadd.f32 %v331, %v583
        %v836 = vadd.f32 %v332, %v584
        %v837 = vadd.f32 %v333, %v585
        %v838 = vadd.f32 %v334, %v586
        %v839 = vadd.f32 %v335, %v587
        %v840 = vadd.f32 %v336, %v588
        %v841 = vadd.f32 %v337, %v589
        %v842 = vadd.f32 %v338, %v590
        %v843 = vadd.f32 %v339, %v591
        %v844 = vadd.f32 %v340, %v592
        %v845 = vadd.f32 %v341, %v593
        %v846 = vadd.f32 %v342, %v594
        %v847 = vadd.f32 %v343, %v595
        %v848 = vadd.f32 %v344, %v596
        %v849 = vadd.f32 %v345, %v597
        %v850 = vadd.f32 %v346, %v598
        %v851 = vadd.f32 %v347, %v599
        %v852 = vadd.f32 %v348, %v600
        %v853 = vadd.f32 %v349, %v601
        %v854 = vadd.f32 %v350, %v602
        %v855 = vadd.f32 %v351, %v603
        %v856 = vadd.f32 %v352, %v604
        %v857 = vadd.f32 %v353, %v605
        %v858 = vadd.f32 %v354, %v606
        %v859 = vadd.f32 %v355, %v607
        %v860 = vadd.f32 %v356, %v608
        %v861 = vadd.f32 %v357, %v609
        %v862 = vadd.f32 %v358, %v610
        %v863 = vadd.f32 %v359, %v611
        %v864 = vadd.f32 %v360, %v612
        %v865 = vadd.f32 %v361, %v613
        %v866 = vadd.f32 %v362, %v614
        %v867 = vadd.f32 %v363, %v615
        %v868 = vadd.f32 %v364, %v616
        %v869 = vadd.f32 %v365, %v617
        %v870 = vadd.f32 %v366, %v618
        %v871 = vadd.f32 %v367, %v619
        %v872 = vadd.f32 %v368, %v620
        %v873 = vadd.f32 %v369, %v621
        %v874 = vadd.f32 %v370, %v622
        %v875 = vadd.f32 %v371, %v623
        %v876 = vadd.f32 %v372, %v624
        %v877 = vadd.f32 %v373, %v625
        %v878 = vadd.f32 %v374, %v626
        %v879 = vadd.f32 %v375, %v627
        %v880 = vadd.f32 %v376, %v628
        %v881 = vadd.f32 %v377, %v629
        %v882 = vadd.f32 %v378, %v630
        %v883 = vadd.f32 %v379, %v631
        %v884 = vadd.f32 %v380, %v632
        %v885 = vadd.f32 %v381, %v633
        %v886 = vadd.f32 %v382, %v634
        %v887 = vadd.f32 %v383, %v635
        %v888 = vadd.f32 %v384, %v636
        %v889 = vadd.f32 %v385, %v637
        %v890 = vadd.f32 %v386, %v638
        %v891 = vadd.f32 %v387, %v639
        %v892 = vadd.f32 %v388, %v640
        %v893 = vadd.f32 %v389, %v641
        %v894 = vadd.f32 %v390, %v642
        %v895 = vadd.f32 %v391, %v643
        %v896 = vadd.f32 %v392, %v644
        %v897 = vadd.f32 %v393, %v645
        %v898 = vadd.f32 %v394, %v646
        %v899 = vadd.f32 %v395, %v647
        %v900 = vadd.f32 %v396, %v648
        %v901 = vadd.f32 %v397, %v649
        %v902 = vadd.f32 %v398, %v650
        %v903 = vadd.f32 %v399, %v651
        %v904 = vadd.f32 %v400, %v652
        %v905 = vadd.f32 %v401, %v653
        %v906 = vadd.f32 %v402, %v654
        %v907 = vadd.f32 %v403, %v655
        %v908 = vadd.f32 %v404, %v656
        %v909 = vadd.f32 %v405, %v657
        %v910 = vadd.f32 %v406, %v658
        %v911 = vadd.f32 %v407, %v659
        %v912 = vadd.f32 %v408, %v660
        %v913 = vadd.f32 %v409, %v661
        %v914 = vadd.f32 %v410, %v662
        %v915 = vadd.f32 %v411, %v663
        %v916 = vadd.f32 %v412, %v664
        %v917 = vadd.f32 %v413, %v665
        %v918 = vadd.f32 %v414, %v666
        %v919 = vadd.f32 %v415, %v667
        %v920 = vadd.f32 %v416, %v668
        %v921 = vadd.f32 %v417, %v669
        %v922 = vadd.f32 %v418, %v670
        %v923 = vadd.f32 %v419, %v671
        %v924 = vadd.f32 %v420, %v672
        %v925 = vadd.f32 %v421, %v673
        %v926 = vadd.f32 %v422, %v674
        %v927 = vadd.f32 %v423, %v675
        %v928 = vadd.f32 %v424, %v676
        %v929 = vadd.f32 %v425, %v677
        %v930 = vadd.f32 %v426, %v678
        %v931 = vadd.f32 %v427, %v679
        %v932 = vadd.f32 %v428, %v680
        %v933 = vadd.f32 %v429, %v681
        %v934 = vadd.f32 %v430, %v682
        %v935 = vadd.f32 %v431, %v683
        %v936 = vadd.f32 %v432, %v684
        %v937 = vadd.f32 %v433, %v685
        %v938 = vadd.f32 %v434, %v686
        %v939 = vadd.f32 %v435, %v687
        %v940 = vadd.f32 %v436, %v688
        %v941 = vadd.f32 %v437, %v689
        %v942 = vadd.f32 %v438, %v690
        %v943 = vadd.f32 %v439, %v691
        %v944 = vadd.f32 %v440, %v692
        %v945 = vadd.f32 %v441, %v693
        %v946 = vadd.f32 %v442, %v694
        %v947 = vadd.f32 %v443, %v695
        %v948 = vadd.f32 %v444, %v696
        %v949 = vadd.f32 %v445, %v697
        %v950 = vadd.f32 %v446, %v698
        %v951 = vadd.f32 %v447, %v699
        %v952 = vadd.f32 %v448, %v700
        %v953 = vadd.f32 %v449, %v701
        %v954 = vadd.f32 %v450, %v702
        %v955 = vadd.f32 %v451, %v703
        %v956 = vadd.f32 %v452, %v704
        %v957 = vadd.f32 %v453, %v705
        %v958 = vadd.f32 %v454, %v706
        %v959 = vadd.f32 %v455, %v707
        %v960 = vadd.f32 %v456, %v708
        %v961 = vadd.f32 %v457, %v709
        %v962 = vadd.f32 %v458, %v710
        %v963 = vadd.f32 %v459, %v711
        %v964 = vadd.f32 %v460, %v712
        %v965 = vadd.f32 %v461, %v713
        %v966 = vadd.f32 %v462, %v714
        %v967 = vadd.f32 %v463, %v715
        %v968 = vadd.f32 %v464, %v716
        %v969 = vadd.f32 %v465, %v717
        %v970 = vadd.f32 %v466, %v718
        %v971 = vadd.f32 %v467, %v719
        %v972 = vadd.f32 %v468, %v720
        %v973 = vadd.f32 %v469, %v721
        %v974 = vadd.f32 %v470, %v722
        %v975 = vadd.f32 %v471, %v723
        %v976 = vadd.f32 %v472, %v724
        %v977 = vadd.f32 %v473, %v725
        %v978 = vadd.f32 %v474, %v726
        %v979 = vadd.f32 %v475, %v727
        %v980 = vadd.f32 %v476, %v728
        %v981 = vadd.f32 %v477, %v729
        %v982 = vadd.f32 %v478, %v730
        %v983 = vadd.f32 %v479, %v731
        %v984 = vadd.f32 %v480, %v732
        %v985 = vadd.f32 %v481, %v733
        %v986 = vadd.f32 %v482, %v734
        %v987 = vadd.f32 %v483, %v735
        %v988 = vadd.f32 %v484, %v736
        %v989 = vadd.f32 %v485, %v737
        %v990 = vadd.f32 %v486, %v738
        %v991 = vadd.f32 %v487, %v739
        %v992 = vmul.f32 %v740, %v740
        %v993 = vmul.f32 %v741, %v741
        %v994 = vmul.f32 %v742, %v742
        %v995 = vmul.f32 %v743, %v743
        %v996 = vmul.f32 %v744, %v744
        %v997 = vmul.f32 %v745, %v745
        %v998 = vmul.f32 %v746, %v746
        %v999 = vmul.f32 %v747, %v747
        %v1000 = vmul.f32 %v748, %v748
        %v1001 = vmul.f32 %v749, %v749
        %v1002 = vmul.f32 %v750, %v750
        %v1003 = vmul.f32 %v751, %v751
        %v1004 = vmul.f32 %v752, %v752
        %v1005 = vmul.f32 %v753, %v753
        %v1006 = vmul.f32 %v754, %v754
        %v1007 = vmul.f32 %v755, %v755
        %v1008 = vmul.f32 %v756, %v756
        %v1009 = vmul.f32 %v757, %v757
        %v1010 = vmul.f32 %v758, %v758
        %v1011 = vmul.f32 %v759, %v759
        %v1012 = vmul.f32 %v760, %v760
        %v1013 = vmul.f32 %v761, %v761
        %v1014 = vmul.f32 %v762, %v762
        %v1015 = vmul.f32 %v763, %v763
        %v1016 = vmul.f32 %v764, %v764
        %v1017 = vmul.f32 %v765, %v765
        %v1018 = vmul.f32 %v766, %v766
        %v1019 = vmul.f32 %v767, %v767
        %v1020 = vmul.f32 %v768, %v768
        %v1021 = vmul.f32 %v769, %v769
        %v1022 = vmul.f32 %v770, %v770
        %v1023 = vmul.f32 %v771, %v771
        %v1024 = vmul.f32 %v772, %v772
        %v1025 = vmul.f32 %v773, %v773
        %v1026 = vmul.f32 %v774, %v774
        %v1027 = vmul.f32 %v775, %v775
        %v1028 = vmul.f32 %v776, %v776
        %v1029 = vmul.f32 %v777, %v777
        %v1030 = vmul.f32 %v778, %v778
        %v1031 = vmul.f32 %v779, %v779
        %v1032 = vmul.f32 %v780, %v780
        %v1033 = vmul.f32 %v781, %v781
        %v1034 = vmul.f32 %v782, %v782
        %v1035 = vmul.f32 %v783, %v783
        %v1036 = vmul.f32 %v784, %v784
        %v1037 = vmul.f32 %v785, %v785
        %v1038 = vmul.f32 %v786, %v786
        %v1039 = vmul.f32 %v787, %v787
        %v1040 = vmul.f32 %v788, %v788
        %v1041 = vmul.f32 %v789, %v789
        %v1042 = vmul.f32 %v790, %v790
        %v1043 = vmul.f32 %v791, %v791
        %v1044 = vmul.f32 %v792, %v792
        %v1045 = vmul.f32 %v793, %v793
        %v1046 = vmul.f32 %v794, %v794
        %v1047 = vmul.f32 %v795, %v795
        %v1048 = vmul.f32 %v796, %v796
        %v1049 = vmul.f32 %v797, %v797
        %v1050 = vmul.f32 %v798, %v798
        %v1051 = vmul.f32 %v799, %v799
        %v1052 = vmul.f32 %v800, %v800
        %v1053 = vmul.f32 %v801, %v801
        %v1054 = vmul.f32 %v802, %v802
        %v1055 = vmul.f32 %v803, %v803
        %v1056 = vmul.f32 %v804, %v804
        %v1057 = vmul.f32 %v805, %v805
        %v1058 = vmul.f32 %v806, %v806
        %v1059 = vmul.f32 %v807, %v807
        %v1060 = vmul.f32 %v808, %v808
        %v1061 = vmul.f32 %v809, %v809
        %v1062 = vmul.f32 %v810, %v810
        %v1063 = vmul.f32 %v811, %v811
        %v1064 = vmul.f32 %v812, %v812
        %v1065 = vmul.f32 %v813, %v813
        %v1066 = vmul.f32 %v814, %v814
        %v1067 = vmul.f32 %v815, %v815
        %v1068 = vmul.f32 %v816, %v816
        %v1069 = vmul.f32 %v817, %v817
        %v1070 = vmul.f32 %v818, %v818
        %v1071 = vmul.f32 %v819, %v819
        %v1072 = vmul.f32 %v820, %v820
        %v1073 = vmul.f32 %v821, %v821
        %v1074 = vmul.f32 %v822, %v822
        %v1075 = vmul.f32 %v823, %v823
        %v1076 = vmul.f32 %v824, %v824
        %v1077 = vmul.f32 %v825, %v825
        %v1078 = vmul.f32 %v826, %v826
        %v1079 = vmul.f32 %v827, %v827
        %v1080 = vmul.f32 %v828, %v828
        %v1081 = vmul.f32 %v829, %v829
        %v1082 = vmul.f32 %v830, %v830
        %v1083 = vmul.f32 %v831, %v831
        %v1084 = vmul.f32 %v832, %v832
        %v1085 = vmul.f32 %v833, %v833
        %v1086 = vmul.f32 %v834, %v834
        %v1087 = vmul.f32 %v835, %v835
        %v1088 = vmul.f32 %v836, %v836
        %v1089 = vmul.f32 %v837, %v837
        %v1090 = vmul.f32 %v838, %v838
        %v1091 = vmul.f32 %v839, %v839
        %v1092 = vmul.f32 %v840, %v840
        %v1093 = vmul.f32 %v841, %v841
        %v1094 = vmul.f32 %v842, %v842
        %v1095 = vmul.f32 %v843, %v843
        %v1096 = vmul.f32 %v844, %v844
        %v1097 = vmul.f32 %v845, %v845
        %v1098 = vmul.f32 %v846, %v846
        %v1099 = vmul.f32 %v847, %v847
        %v1100 = vmul.f32 %v848, %v848
        %v1101 = vmul.f32 %v849, %v849
        %v1102 = vmul.f32 %v850, %v850
        %v1103 = vmul.f32 %v851, %v851
        %v1104 = vmul.f32 %v852, %v852
        %v1105 = vmul.f32 %v853, %v853
        %v1106 = vmul.f32 %v854, %v854
        %v1107 = vmul.f32 %v855, %v855
        %v1108 = vmul.f32 %v856, %v856
        %v1109 = vmul.f32 %v857, %v857
        %v1110 = vmul.f32 %v858, %v858
        %v1111 = vmul.f32 %v859, %v859
        %v1112 = vmul.f32 %v860, %v860
        %v1113 = vmul.f32 %v861, %v861
        %v1114 = vmul.f32 %v862, %v862
        %v1115 = vmul.f32 %v863, %v863
        %v1116 = vmul.f32 %v864, %v864
        %v1117 = vmul.f32 %v865, %v865
        %v1118 = vmul.f32 %v866, %v866
        %v1119 = vmul.f32 %v867, %v867
        %v1120 = vmul.f32 %v868, %v868
        %v1121 = vmul.f32 %v869, %v869
        %v1122 = vmul.f32 %v870, %v870
        %v1123 = vmul.f32 %v871, %v871
        %v1124 = vmul.f32 %v872, %v872
        %v1125 = vmul.f32 %v873, %v873
        %v1126 = vmul.f32 %v874, %v874
        %v1127 = vmul.f32 %v875, %v875
        %v1128 = vmul.f32 %v876, %v876
        %v1129 = vmul.f32 %v877, %v877
        %v1130 = vmul.f32 %v878, %v878
        %v1131 = vmul.f32 %v879, %v879
        %v1132 = vmul.f32 %v880, %v880
        %v1133 = vmul.f32 %v881, %v881
        %v1134 = vmul.f32 %v882, %v882
        %v1135 = vmul.f32 %v883, %v883
        %v1136 = vmul.f32 %v884, %v884
        %v1137 = vmul.f32 %v885, %v885
        %v1138 = vmul.f32 %v886, %v886
        %v1139 = vmul.f32 %v887, %v887
        %v1140 = vmul.f32 %v888, %v888
        %v1141 = vmul.f32 %v889, %v889
        %v1142 = vmul.f32 %v890, %v890
        %v1143 = vmul.f32 %v891, %v891
        %v1144 = vmul.f32 %v892, %v892
        %v1145 = vmul.f32 %v893, %v893
        %v1146 = vmul.f32 %v894, %v894
        %v1147 = vmul.f32 %v895, %v895
        %v1148 = vmul.f32 %v896, %v896
        %v1149 = vmul.f32 %v897, %v897
        %v1150 = vmul.f32 %v898, %v898
        %v1151 = vmul.f32 %v899, %v899
        %v1152 = vmul.f32 %v900, %v900
        %v1153 = vmul.f32 %v901, %v901
        %v1154 = vmul.f32 %v902, %v902
        %v1155 = vmul.f32 %v903, %v903
        %v1156 = vmul.f32 %v904, %v904
        %v1157 = vmul.f32 %v905, %v905
        %v1158 = vmul.f32 %v906, %v906
        %v1159 = vmul.f32 %v907, %v907
        %v1160 = vmul.f32 %v908, %v908
        %v1161 = vmul.f32 %v909, %v909
        %v1162 = vmul.f32 %v910, %v910
        %v1163 = vmul.f32 %v911, %v911
        %v1164 = vmul.f32 %v912, %v912
        %v1165 = vmul.f32 %v913, %v913
        %v1166 = vmul.f32 %v914, %v914
        %v1167 = vmul.f32 %v915, %v915
        %v1168 = vmul.f32 %v916, %v916
        %v1169 = vmul.f32 %v917, %v917
        %v1170 = vmul.f32 %v918, %v918
        %v1171 = vmul.f32 %v919, %v919
        %v1172 = vmul.f32 %v920, %v920
        %v1173 = vmul.f32 %v921, %v921
        %v1174 = vmul.f32 %v922, %v922
        %v1175 = vmul.f32 %v923, %v923
        %v1176 = vmul.f32 %v924, %v924
        %v1177 = vmul.f32 %v925, %v925
        %v1178 = vmul.f32 %v926, %v926
        %v1179 = vmul.f32 %v927, %v927
        %v1180 = vmul.f32 %v928, %v928
        %v1181 = vmul.f32 %v929, %v929
        %v1182 = vmul.f32 %v930, %v930
        %v1183 = vmul.f32 %v931, %v931
        %v1184 = vmul.f32 %v932, %v932
        %v1185 = vmul.f32 %v933, %v933
        %v1186 = vmul.f32 %v934, %v934
        %v1187 = vmul.f32 %v935, %v935
        %v1188 = vmul.f32 %v936, %v936
        %v1189 = vmul.f32 %v937, %v937
        %v1190 = vmul.f32 %v938, %v938
        %v1191 = vmul.f32 %v939, %v939
        %v1192 = vmul.f32 %v940, %v940
        %v1193 = vmul.f32 %v941, %v941
        %v1194 = vmul.f32 %v942, %v942
        %v1195 = vmul.f32 %v943, %v943
        %v1196 = vmul.f32 %v944, %v944
        %v1197 = vmul.f32 %v945, %v945
        %v1198 = vmul.f32 %v946, %v946
        %v1199 = vmul.f32 %v947, %v947
        %v1200 = vmul.f32 %v948, %v948
        %v1201 = vmul.f32 %v949, %v949
        %v1202 = vmul.f32 %v950, %v950
        %v1203 = vmul.f32 %v951, %v951
        %v1204 = vmul.f32 %v952, %v952
        %v1205 = vmul.f32 %v953, %v953
        %v1206 = vmul.f32 %v954, %v954
        %v1207 = vmul.f32 %v955, %v955
        %v1208 = vmul.f32 %v956, %v956
        %v1209 = vmul.f32 %v957, %v957
        %v1210 = vmul.f32 %v958, %v958
        %v1211 = vmul.f32 %v959, %v959
        %v1212 = vmul.f32 %v960, %v960
        %v1213 = vmul.f32 %v961, %v961
        %v1214 = vmul.f32 %v962, %v962
        %v1215 = vmul.f32 %v963, %v963
        %v1216 = vmul.f32 %v964, %v964
        %v1217 = vmul.f32 %v965, %v965
        %v1218 = vmul.f32 %v966, %v966
        %v1219 = vmul.f32 %v967, %v967
        %v1220 = vmul.f32 %v968, %v968
        %v1221 = vmul.f32 %v969, %v969
        %v1222 = vmul.f32 %v970, %v970
        %v1223 = vmul.f32 %v971, %v971
        %v1224 = vmul.f32 %v972, %v972
        %v1225 = vmul.f32 %v973, %v973
        %v1226 = vmul.f32 %v974, %v974
        %v1227 = vmul.f32 %v975, %v975
        %v1228 = vmul.f32 %v976, %v976
        %v1229 = vmul.f32 %v977, %v977
        %v1230 = vmul.f32 %v978, %v978
        %v1231 = vmul.f32 %v979, %v979
        %v1232 = vmul.f32 %v980, %v980
        %v1233 = vmul.f32 %v981, %v981
        %v1234 = vmul.f32 %v982, %v982
        %v1235 = vmul.f32 %v983, %v983
        %v1236 = vmul.f32 %v984, %v984
        %v1237 = vmul.f32 %v985, %v985
        %v1238 = vmul.f32 %v986, %v986
        %v1239 = vmul.f32 %v987, %v987
        %v1240 = vmul.f32 %v988, %v988
        %v1241 = vmul.f32 %v989, %v989
        %v1242 = vmul.f32 %v990, %v990
        %v1243 = vmul.f32 %v991, %v991
        %v1244 = vadd.f32 %v992, %v993
        %v1245 = vadd.f32 %v1244, %v994
        %v1246 = vadd.f32 %v1245, %v995
        %1247 = vadd.xlane.f32.xlu0 %v1246
        %v1248 = vpop.xlane.xlu0 %1247
        %v1249 = vadd.f32 %v996, %v997
        %v1250 = vadd.f32 %v1249, %v998
        %v1251 = vadd.f32 %v1250, %v999
        %1252 = vadd.xlane.f32.xlu0 %v1251
        %v1253 = vpop.xlane.xlu0 %1252
        %v1254 = vadd.f32 %v1000, %v1001
        %v1255 = vadd.f32 %v1254, %v1002
        %v1256 = vadd.f32 %v1255, %v1003
        %1257 = vadd.xlane.f32.xlu0 %v1256
        %v1258 = vpop.xlane.xlu0 %1257
        %v1259 = vadd.f32 %v1004, %v1005
        %v1260 = vadd.f32 %v1259, %v1006
        %v1261 = vadd.f32 %v1260, %v1007
        %1262 = vadd.xlane.f32.xlu0 %v1261
        %v1263 = vpop.xlane.xlu0 %1262
        %v1264 = vadd.f32 %v1008, %v1009
        %v1265 = vadd.f32 %v1264, %v1010
        %v1266 = vadd.f32 %v1265, %v1011
        %1267 = vadd.xlane.f32.xlu0 %v1266
        %v1268 = vpop.xlane.xlu0 %1267
        %v1269 = vadd.f32 %v1012, %v1013
        %v1270 = vadd.f32 %v1269, %v1014
        %v1271 = vadd.f32 %v1270, %v1015
        %1272 = vadd.xlane.f32.xlu0 %v1271
        %v1273 = vpop.xlane.xlu0 %1272
        %v1274 = vadd.f32 %v1016, %v1017
        %v1275 = vadd.f32 %v1274, %v1018
        %v1276 = vadd.f32 %v1275, %v1019
        %1277 = vadd.xlane.f32.xlu0 %v1276
        %v1278 = vpop.xlane.xlu0 %1277
        %v1279 = vadd.f32 %v1020, %v1021
        %v1280 = vadd.f32 %v1279, %v1022
        %v1281 = vadd.f32 %v1280, %v1023
        %1282 = vadd.xlane.f32.xlu0 %v1281
        %v1283 = vpop.xlane.xlu0 %1282
        %v1284 = vadd.f32 %v1024, %v1025
        %v1285 = vadd.f32 %v1284, %v1026
        %v1286 = vadd.f32 %v1285, %v1027
        %1287 = vadd.xlane.f32.xlu0 %v1286
        %v1288 = vpop.xlane.xlu0 %1287
        %v1289 = vadd.f32 %v1028, %v1029
        %v1290 = vadd.f32 %v1289, %v1030
        %v1291 = vadd.f32 %v1290, %v1031
        %1292 = vadd.xlane.f32.xlu0 %v1291
        %v1293 = vpop.xlane.xlu0 %1292
        %v1294 = vadd.f32 %v1032, %v1033
        %v1295 = vadd.f32 %v1294, %v1034
        %v1296 = vadd.f32 %v1295, %v1035
        %1297 = vadd.xlane.f32.xlu0 %v1296
        %v1298 = vpop.xlane.xlu0 %1297
        %v1299 = vadd.f32 %v1036, %v1037
        %v1300 = vadd.f32 %v1299, %v1038
        %v1301 = vadd.f32 %v1300, %v1039
        %1302 = vadd.xlane.f32.xlu0 %v1301
        %v1303 = vpop.xlane.xlu0 %1302
        %v1304 = vadd.f32 %v1040, %v1041
        %v1305 = vadd.f32 %v1304, %v1042
        %v1306 = vadd.f32 %v1305, %v1043
        %1307 = vadd.xlane.f32.xlu0 %v1306
        %v1308 = vpop.xlane.xlu0 %1307
        %v1309 = vadd.f32 %v1044, %v1045
        %v1310 = vadd.f32 %v1309, %v1046
        %v1311 = vadd.f32 %v1310, %v1047
        %1312 = vadd.xlane.f32.xlu0 %v1311
        %v1313 = vpop.xlane.xlu0 %1312
        %v1314 = vadd.f32 %v1048, %v1049
        %v1315 = vadd.f32 %v1314, %v1050
        %v1316 = vadd.f32 %v1315, %v1051
        %1317 = vadd.xlane.f32.xlu0 %v1316
        %v1318 = vpop.xlane.xlu0 %1317
        %v1319 = vadd.f32 %v1052, %v1053
        %v1320 = vadd.f32 %v1319, %v1054
        %v1321 = vadd.f32 %v1320, %v1055
        %1322 = vadd.xlane.f32.xlu0 %v1321
        %v1323 = vpop.xlane.xlu0 %1322
        %v1324 = vadd.f32 %v1056, %v1057
        %v1325 = vadd.f32 %v1324, %v1058
        %v1326 = vadd.f32 %v1325, %v1059
        %1327 = vadd.xlane.f32.xlu0 %v1326
        %v1328 = vpop.xlane.xlu0 %1327
        %v1329 = vadd.f32 %v1060, %v1061
        %v1330 = vadd.f32 %v1329, %v1062
        %v1331 = vadd.f32 %v1330, %v1063
        %1332 = vadd.xlane.f32.xlu0 %v1331
        %v1333 = vpop.xlane.xlu0 %1332
        %v1334 = vadd.f32 %v1064, %v1065
        %v1335 = vadd.f32 %v1334, %v1066
        %v1336 = vadd.f32 %v1335, %v1067
        %1337 = vadd.xlane.f32.xlu0 %v1336
        %v1338 = vpop.xlane.xlu0 %1337
        %v1339 = vadd.f32 %v1068, %v1069
        %v1340 = vadd.f32 %v1339, %v1070
        %v1341 = vadd.f32 %v1340, %v1071
        %1342 = vadd.xlane.f32.xlu0 %v1341
        %v1343 = vpop.xlane.xlu0 %1342
        %v1344 = vadd.f32 %v1072, %v1073
        %v1345 = vadd.f32 %v1344, %v1074
        %v1346 = vadd.f32 %v1345, %v1075
        %1347 = vadd.xlane.f32.xlu0 %v1346
        %v1348 = vpop.xlane.xlu0 %1347
        %v1349 = vadd.f32 %v1076, %v1077
        %v1350 = vadd.f32 %v1349, %v1078
        %v1351 = vadd.f32 %v1350, %v1079
        %1352 = vadd.xlane.f32.xlu0 %v1351
        %v1353 = vpop.xlane.xlu0 %1352
        %v1354 = vadd.f32 %v1080, %v1081
        %v1355 = vadd.f32 %v1354, %v1082
        %v1356 = vadd.f32 %v1355, %v1083
        %1357 = vadd.xlane.f32.xlu0 %v1356
        %v1358 = vpop.xlane.xlu0 %1357
        %v1359 = vadd.f32 %v1084, %v1085
        %v1360 = vadd.f32 %v1359, %v1086
        %v1361 = vadd.f32 %v1360, %v1087
        %1362 = vadd.xlane.f32.xlu0 %v1361
        %v1363 = vpop.xlane.xlu0 %1362
        %v1364 = vadd.f32 %v1088, %v1089
        %v1365 = vadd.f32 %v1364, %v1090
        %v1366 = vadd.f32 %v1365, %v1091
        %1367 = vadd.xlane.f32.xlu0 %v1366
        %v1368 = vpop.xlane.xlu0 %1367
        %v1369 = vadd.f32 %v1092, %v1093
        %v1370 = vadd.f32 %v1369, %v1094
        %v1371 = vadd.f32 %v1370, %v1095
        %1372 = vadd.xlane.f32.xlu0 %v1371
        %v1373 = vpop.xlane.xlu0 %1372
        %v1374 = vadd.f32 %v1096, %v1097
        %v1375 = vadd.f32 %v1374, %v1098
        %v1376 = vadd.f32 %v1375, %v1099
        %1377 = vadd.xlane.f32.xlu0 %v1376
        %v1378 = vpop.xlane.xlu0 %1377
        %v1379 = vadd.f32 %v1100, %v1101
        %v1380 = vadd.f32 %v1379, %v1102
        %v1381 = vadd.f32 %v1380, %v1103
        %1382 = vadd.xlane.f32.xlu0 %v1381
        %v1383 = vpop.xlane.xlu0 %1382
        %v1384 = vadd.f32 %v1104, %v1105
        %v1385 = vadd.f32 %v1384, %v1106
        %v1386 = vadd.f32 %v1385, %v1107
        %1387 = vadd.xlane.f32.xlu0 %v1386
        %v1388 = vpop.xlane.xlu0 %1387
        %v1389 = vadd.f32 %v1108, %v1109
        %v1390 = vadd.f32 %v1389, %v1110
        %v1391 = vadd.f32 %v1390, %v1111
        %1392 = vadd.xlane.f32.xlu0 %v1391
        %v1393 = vpop.xlane.xlu0 %1392
        %v1394 = vadd.f32 %v1112, %v1113
        %v1395 = vadd.f32 %v1394, %v1114
        %v1396 = vadd.f32 %v1395, %v1115
        %1397 = vadd.xlane.f32.xlu0 %v1396
        %v1398 = vpop.xlane.xlu0 %1397
        %v1399 = vadd.f32 %v1116, %v1117
        %v1400 = vadd.f32 %v1399, %v1118
        %v1401 = vadd.f32 %v1400, %v1119
        %1402 = vadd.xlane.f32.xlu0 %v1401
        %v1403 = vpop.xlane.xlu0 %1402
        %v1404 = vadd.f32 %v1120, %v1121
        %v1405 = vadd.f32 %v1404, %v1122
        %v1406 = vadd.f32 %v1405, %v1123
        %1407 = vadd.xlane.f32.xlu0 %v1406
        %v1408 = vpop.xlane.xlu0 %1407
        %v1409 = vadd.f32 %v1124, %v1125
        %v1410 = vadd.f32 %v1409, %v1126
        %v1411 = vadd.f32 %v1410, %v1127
        %1412 = vadd.xlane.f32.xlu0 %v1411
        %v1413 = vpop.xlane.xlu0 %1412
        %v1414 = vadd.f32 %v1128, %v1129
        %v1415 = vadd.f32 %v1414, %v1130
        %v1416 = vadd.f32 %v1415, %v1131
        %1417 = vadd.xlane.f32.xlu0 %v1416
        %v1418 = vpop.xlane.xlu0 %1417
        %v1419 = vadd.f32 %v1132, %v1133
        %v1420 = vadd.f32 %v1419, %v1134
        %v1421 = vadd.f32 %v1420, %v1135
        %1422 = vadd.xlane.f32.xlu0 %v1421
        %v1423 = vpop.xlane.xlu0 %1422
        %v1424 = vadd.f32 %v1136, %v1137
        %v1425 = vadd.f32 %v1424, %v1138
        %v1426 = vadd.f32 %v1425, %v1139
        %1427 = vadd.xlane.f32.xlu0 %v1426
        %v1428 = vpop.xlane.xlu0 %1427
        %v1429 = vadd.f32 %v1140, %v1141
        %v1430 = vadd.f32 %v1429, %v1142
        %v1431 = vadd.f32 %v1430, %v1143
        %1432 = vadd.xlane.f32.xlu0 %v1431
        %v1433 = vpop.xlane.xlu0 %1432
        %v1434 = vadd.f32 %v1144, %v1145
        %v1435 = vadd.f32 %v1434, %v1146
        %v1436 = vadd.f32 %v1435, %v1147
        %1437 = vadd.xlane.f32.xlu0 %v1436
        %v1438 = vpop.xlane.xlu0 %1437
        %v1439 = vadd.f32 %v1148, %v1149
        %v1440 = vadd.f32 %v1439, %v1150
        %v1441 = vadd.f32 %v1440, %v1151
        %1442 = vadd.xlane.f32.xlu0 %v1441
        %v1443 = vpop.xlane.xlu0 %1442
        %v1444 = vadd.f32 %v1152, %v1153
        %v1445 = vadd.f32 %v1444, %v1154
        %v1446 = vadd.f32 %v1445, %v1155
        %1447 = vadd.xlane.f32.xlu0 %v1446
        %v1448 = vpop.xlane.xlu0 %1447
        %v1449 = vadd.f32 %v1156, %v1157
        %v1450 = vadd.f32 %v1449, %v1158
        %v1451 = vadd.f32 %v1450, %v1159
        %1452 = vadd.xlane.f32.xlu0 %v1451
        %v1453 = vpop.xlane.xlu0 %1452
        %v1454 = vadd.f32 %v1160, %v1161
        %v1455 = vadd.f32 %v1454, %v1162
        %v1456 = vadd.f32 %v1455, %v1163
        %1457 = vadd.xlane.f32.xlu0 %v1456
        %v1458 = vpop.xlane.xlu0 %1457
        %v1459 = vadd.f32 %v1164, %v1165
        %v1460 = vadd.f32 %v1459, %v1166
        %v1461 = vadd.f32 %v1460, %v1167
        %1462 = vadd.xlane.f32.xlu0 %v1461
        %v1463 = vpop.xlane.xlu0 %1462
        %v1464 = vadd.f32 %v1168, %v1169
        %v1465 = vadd.f32 %v1464, %v1170
        %v1466 = vadd.f32 %v1465, %v1171
        %1467 = vadd.xlane.f32.xlu0 %v1466
        %v1468 = vpop.xlane.xlu0 %1467
        %v1469 = vadd.f32 %v1172, %v1173
        %v1470 = vadd.f32 %v1469, %v1174
        %v1471 = vadd.f32 %v1470, %v1175
        %1472 = vadd.xlane.f32.xlu0 %v1471
        %v1473 = vpop.xlane.xlu0 %1472
        %v1474 = vadd.f32 %v1176, %v1177
        %v1475 = vadd.f32 %v1474, %v1178
        %v1476 = vadd.f32 %v1475, %v1179
        %1477 = vadd.xlane.f32.xlu0 %v1476
        %v1478 = vpop.xlane.xlu0 %1477
        %v1479 = vadd.f32 %v1180, %v1181
        %v1480 = vadd.f32 %v1479, %v1182
        %v1481 = vadd.f32 %v1480, %v1183
        %1482 = vadd.xlane.f32.xlu0 %v1481
        %v1483 = vpop.xlane.xlu0 %1482
        %v1484 = vadd.f32 %v1184, %v1185
        %v1485 = vadd.f32 %v1484, %v1186
        %v1486 = vadd.f32 %v1485, %v1187
        %1487 = vadd.xlane.f32.xlu0 %v1486
        %v1488 = vpop.xlane.xlu0 %1487
        %v1489 = vadd.f32 %v1188, %v1189
        %v1490 = vadd.f32 %v1489, %v1190
        %v1491 = vadd.f32 %v1490, %v1191
        %1492 = vadd.xlane.f32.xlu0 %v1491
        %v1493 = vpop.xlane.xlu0 %1492
        %v1494 = vadd.f32 %v1192, %v1193
        %v1495 = vadd.f32 %v1494, %v1194
        %v1496 = vadd.f32 %v1495, %v1195
        %1497 = vadd.xlane.f32.xlu0 %v1496
        %v1498 = vpop.xlane.xlu0 %1497
        %v1499 = vadd.f32 %v1196, %v1197
        %v1500 = vadd.f32 %v1499, %v1198
        %v1501 = vadd.f32 %v1500, %v1199
        %1502 = vadd.xlane.f32.xlu0 %v1501
        %v1503 = vpop.xlane.xlu0 %1502
        %v1504 = vadd.f32 %v1200, %v1201
        %v1505 = vadd.f32 %v1504, %v1202
        %v1506 = vadd.f32 %v1505, %v1203
        %1507 = vadd.xlane.f32.xlu0 %v1506
        %v1508 = vpop.xlane.xlu0 %1507
        %v1509 = vadd.f32 %v1204, %v1205
        %v1510 = vadd.f32 %v1509, %v1206
        %v1511 = vadd.f32 %v1510, %v1207
        %1512 = vadd.xlane.f32.xlu0 %v1511
        %v1513 = vpop.xlane.xlu0 %1512
        %v1514 = vadd.f32 %v1208, %v1209
        %v1515 = vadd.f32 %v1514, %v1210
        %v1516 = vadd.f32 %v1515, %v1211
        %1517 = vadd.xlane.f32.xlu0 %v1516
        %v1518 = vpop.xlane.xlu0 %1517
        %v1519 = vadd.f32 %v1212, %v1213
        %v1520 = vadd.f32 %v1519, %v1214
        %v1521 = vadd.f32 %v1520, %v1215
        %1522 = vadd.xlane.f32.xlu0 %v1521
        %v1523 = vpop.xlane.xlu0 %1522
        %v1524 = vadd.f32 %v1216, %v1217
        %v1525 = vadd.f32 %v1524, %v1218
        %v1526 = vadd.f32 %v1525, %v1219
        %1527 = vadd.xlane.f32.xlu0 %v1526
        %v1528 = vpop.xlane.xlu0 %1527
        %v1529 = vadd.f32 %v1220, %v1221
        %v1530 = vadd.f32 %v1529, %v1222
        %v1531 = vadd.f32 %v1530, %v1223
        %1532 = vadd.xlane.f32.xlu0 %v1531
        %v1533 = vpop.xlane.xlu0 %1532
        %v1534 = vadd.f32 %v1224, %v1225
        %v1535 = vadd.f32 %v1534, %v1226
        %v1536 = vadd.f32 %v1535, %v1227
        %1537 = vadd.xlane.f32.xlu0 %v1536
        %v1538 = vpop.xlane.xlu0 %1537
        %v1539 = vadd.f32 %v1228, %v1229
        %v1540 = vadd.f32 %v1539, %v1230
        %v1541 = vadd.f32 %v1540, %v1231
        %1542 = vadd.xlane.f32.xlu0 %v1541
        %v1543 = vpop.xlane.xlu0 %1542
        %v1544 = vadd.f32 %v1232, %v1233
        %v1545 = vadd.f32 %v1544, %v1234
        %v1546 = vadd.f32 %v1545, %v1235
        %1547 = vadd.xlane.f32.xlu0 %v1546
        %v1548 = vpop.xlane.xlu0 %1547
        %v1549 = vadd.f32 %v1236, %v1237
        %v1550 = vadd.f32 %v1549, %v1238
        %v1551 = vadd.f32 %v1550, %v1239
        %1552 = vadd.xlane.f32.xlu0 %v1551
        %v1553 = vpop.xlane.xlu0 %1552
        %v1554 = vadd.f32 %v1240, %v1241
        %v1555 = vadd.f32 %v1554, %v1242
        %v1556 = vadd.f32 %v1555, %v1243
        %1557 = vadd.xlane.f32.xlu0 %v1556
        %v1558 = vpop.xlane.xlu0 %1557
        %v1559 = vrsqrt.pop %v1248
        %v1560 = vrsqrt.pop %v1253
        %v1561 = vrsqrt.pop %v1258
        %v1562 = vrsqrt.pop %v1263
        %v1563 = vrsqrt.pop %v1268
        %v1564 = vrsqrt.pop %v1273
        %v1565 = vrsqrt.pop %v1278
        %v1566 = vrsqrt.pop %v1283
        %v1567 = vrsqrt.pop %v1288
        %v1568 = vrsqrt.pop %v1293
        %v1569 = vrsqrt.pop %v1298
        %v1570 = vrsqrt.pop %v1303
        %v1571 = vrsqrt.pop %v1308
        %v1572 = vrsqrt.pop %v1313
        %v1573 = vrsqrt.pop %v1318
        %v1574 = vrsqrt.pop %v1323
        %v1575 = vrsqrt.pop %v1328
        %v1576 = vrsqrt.pop %v1333
        %v1577 = vrsqrt.pop %v1338
        %v1578 = vrsqrt.pop %v1343
        %v1579 = vrsqrt.pop %v1348
        %v1580 = vrsqrt.pop %v1353
        %v1581 = vrsqrt.pop %v1358
        %v1582 = vrsqrt.pop %v1363
        %v1583 = vrsqrt.pop %v1368
        %v1584 = vrsqrt.pop %v1373
        %v1585 = vrsqrt.pop %v1378
        %v1586 = vrsqrt.pop %v1383
        %v1587 = vrsqrt.pop %v1388
        %v1588 = vrsqrt.pop %v1393
        %v1589 = vrsqrt.pop %v1398
        %v1590 = vrsqrt.pop %v1403
        %v1591 = vrsqrt.pop %v1408
        %v1592 = vrsqrt.pop %v1413
        %v1593 = vrsqrt.pop %v1418
        %v1594 = vrsqrt.pop %v1423
        %v1595 = vrsqrt.pop %v1428
        %v1596 = vrsqrt.pop %v1433
        %v1597 = vrsqrt.pop %v1438
        %v1598 = vrsqrt.pop %v1443
        %v1599 = vrsqrt.pop %v1448
        %v1600 = vrsqrt.pop %v1453
        %v1601 = vrsqrt.pop %v1458
        %v1602 = vrsqrt.pop %v1463
        %v1603 = vrsqrt.pop %v1468
        %v1604 = vrsqrt.pop %v1473
        %v1605 = vrsqrt.pop %v1478
        %v1606 = vrsqrt.pop %v1483
        %v1607 = vrsqrt.pop %v1488
        %v1608 = vrsqrt.pop %v1493
        %v1609 = vrsqrt.pop %v1498
        %v1610 = vrsqrt.pop %v1503
        %v1611 = vrsqrt.pop %v1508
        %v1612 = vrsqrt.pop %v1513
        %v1613 = vrsqrt.pop %v1518
        %v1614 = vrsqrt.pop %v1523
        %v1615 = vrsqrt.pop %v1528
        %v1616 = vrsqrt.pop %v1533
        %v1617 = vrsqrt.pop %v1538
        %v1618 = vrsqrt.pop %v1543
        %v1619 = vrsqrt.pop %v1548
        %v1620 = vrsqrt.pop %v1553
        %v1621 = vrsqrt.pop %v1558
        %v1622 = vmul.f32 %v740, %v1559
        %v1623 = vmul.f32 %v741, %v1559
        %v1624 = vmul.f32 %v742, %v1559
        %v1625 = vmul.f32 %v743, %v1559
        %v1626 = vmul.f32 %v744, %v1560
        %v1627 = vmul.f32 %v745, %v1560
        %v1628 = vmul.f32 %v746, %v1560
        %v1629 = vmul.f32 %v747, %v1560
        %v1630 = vmul.f32 %v748, %v1561
        %v1631 = vmul.f32 %v749, %v1561
        %v1632 = vmul.f32 %v750, %v1561
        %v1633 = vmul.f32 %v751, %v1561
        %v1634 = vmul.f32 %v752, %v1562
        %v1635 = vmul.f32 %v753, %v1562
        %v1636 = vmul.f32 %v754, %v1562
        %v1637 = vmul.f32 %v755, %v1562
        %v1638 = vmul.f32 %v756, %v1563
        %v1639 = vmul.f32 %v757, %v1563
        %v1640 = vmul.f32 %v758, %v1563
        %v1641 = vmul.f32 %v759, %v1563
        %v1642 = vmul.f32 %v760, %v1564
        %v1643 = vmul.f32 %v761, %v1564
        %v1644 = vmul.f32 %v762, %v1564
        %v1645 = vmul.f32 %v763, %v1564
        %v1646 = vmul.f32 %v764, %v1565
        %v1647 = vmul.f32 %v765, %v1565
        %v1648 = vmul.f32 %v766, %v1565
        %v1649 = vmul.f32 %v767, %v1565
        %v1650 = vmul.f32 %v768, %v1566
        %v1651 = vmul.f32 %v769, %v1566
        %v1652 = vmul.f32 %v770, %v1566
        %v1653 = vmul.f32 %v771, %v1566
        %v1654 = vmul.f32 %v772, %v1567
        %v1655 = vmul.f32 %v773, %v1567
        %v1656 = vmul.f32 %v774, %v1567
        %v1657 = vmul.f32 %v775, %v1567
        %v1658 = vmul.f32 %v776, %v1568
        %v1659 = vmul.f32 %v777, %v1568
        %v1660 = vmul.f32 %v778, %v1568
        %v1661 = vmul.f32 %v779, %v1568
        %v1662 = vmul.f32 %v780, %v1569
        %v1663 = vmul.f32 %v781, %v1569
        %v1664 = vmul.f32 %v782, %v1569
        %v1665 = vmul.f32 %v783, %v1569
        %v1666 = vmul.f32 %v784, %v1570
        %v1667 = vmul.f32 %v785, %v1570
        %v1668 = vmul.f32 %v786, %v1570
        %v1669 = vmul.f32 %v787, %v1570
        %v1670 = vmul.f32 %v788, %v1571
        %v1671 = vmul.f32 %v789, %v1571
        %v1672 = vmul.f32 %v790, %v1571
        %v1673 = vmul.f32 %v791, %v1571
        %v1674 = vmul.f32 %v792, %v1572
        %v1675 = vmul.f32 %v793, %v1572
        %v1676 = vmul.f32 %v794, %v1572
        %v1677 = vmul.f32 %v795, %v1572
        %v1678 = vmul.f32 %v796, %v1573
        %v1679 = vmul.f32 %v797, %v1573
        %v1680 = vmul.f32 %v798, %v1573
        %v1681 = vmul.f32 %v799, %v1573
        %v1682 = vmul.f32 %v800, %v1574
        %v1683 = vmul.f32 %v801, %v1574
        %v1684 = vmul.f32 %v802, %v1574
        %v1685 = vmul.f32 %v803, %v1574
        %v1686 = vmul.f32 %v804, %v1575
        %v1687 = vmul.f32 %v805, %v1575
        %v1688 = vmul.f32 %v806, %v1575
        %v1689 = vmul.f32 %v807, %v1575
        %v1690 = vmul.f32 %v808, %v1576
        %v1691 = vmul.f32 %v809, %v1576
        %v1692 = vmul.f32 %v810, %v1576
        %v1693 = vmul.f32 %v811, %v1576
        %v1694 = vmul.f32 %v812, %v1577
        %v1695 = vmul.f32 %v813, %v1577
        %v1696 = vmul.f32 %v814, %v1577
        %v1697 = vmul.f32 %v815, %v1577
        %v1698 = vmul.f32 %v816, %v1578
        %v1699 = vmul.f32 %v817, %v1578
        %v1700 = vmul.f32 %v818, %v1578
        %v1701 = vmul.f32 %v819, %v1578
        %v1702 = vmul.f32 %v820, %v1579
        %v1703 = vmul.f32 %v821, %v1579
        %v1704 = vmul.f32 %v822, %v1579
        %v1705 = vmul.f32 %v823, %v1579
        %v1706 = vmul.f32 %v824, %v1580
        %v1707 = vmul.f32 %v825, %v1580
        %v1708 = vmul.f32 %v826, %v1580
        %v1709 = vmul.f32 %v827, %v1580
        %v1710 = vmul.f32 %v828, %v1581
        %v1711 = vmul.f32 %v829, %v1581
        %v1712 = vmul.f32 %v830, %v1581
        %v1713 = vmul.f32 %v831, %v1581
        %v1714 = vmul.f32 %v832, %v1582
        %v1715 = vmul.f32 %v833, %v1582
        %v1716 = vmul.f32 %v834, %v1582
        %v1717 = vmul.f32 %v835, %v1582
        %v1718 = vmul.f32 %v836, %v1583
        %v1719 = vmul.f32 %v837, %v1583
        %v1720 = vmul.f32 %v838, %v1583
        %v1721 = vmul.f32 %v839, %v1583
        %v1722 = vmul.f32 %v840, %v1584
        %v1723 = vmul.f32 %v841, %v1584
        %v1724 = vmul.f32 %v842, %v1584
        %v1725 = vmul.f32 %v843, %v1584
        %v1726 = vmul.f32 %v844, %v1585
        %v1727 = vmul.f32 %v845, %v1585
        %v1728 = vmul.f32 %v846, %v1585
        %v1729 = vmul.f32 %v847, %v1585
        %v1730 = vmul.f32 %v848, %v1586
        %v1731 = vmul.f32 %v849, %v1586
        %v1732 = vmul.f32 %v850, %v1586
        %v1733 = vmul.f32 %v851, %v1586
        %v1734 = vmul.f32 %v852, %v1587
        %v1735 = vmul.f32 %v853, %v1587
        %v1736 = vmul.f32 %v854, %v1587
        %v1737 = vmul.f32 %v855, %v1587
        %v1738 = vmul.f32 %v856, %v1588
        %v1739 = vmul.f32 %v857, %v1588
        %v1740 = vmul.f32 %v858, %v1588
        %v1741 = vmul.f32 %v859, %v1588
        %v1742 = vmul.f32 %v860, %v1589
        %v1743 = vmul.f32 %v861, %v1589
        %v1744 = vmul.f32 %v862, %v1589
        %v1745 = vmul.f32 %v863, %v1589
        %v1746 = vmul.f32 %v864, %v1590
        %v1747 = vmul.f32 %v865, %v1590
        %v1748 = vmul.f32 %v866, %v1590
        %v1749 = vmul.f32 %v867, %v1590
        %v1750 = vmul.f32 %v868, %v1591
        %v1751 = vmul.f32 %v869, %v1591
        %v1752 = vmul.f32 %v870, %v1591
        %v1753 = vmul.f32 %v871, %v1591
        %v1754 = vmul.f32 %v872, %v1592
        %v1755 = vmul.f32 %v873, %v1592
        %v1756 = vmul.f32 %v874, %v1592
        %v1757 = vmul.f32 %v875, %v1592
        %v1758 = vmul.f32 %v876, %v1593
        %v1759 = vmul.f32 %v877, %v1593
        %v1760 = vmul.f32 %v878, %v1593
        %v1761 = vmul.f32 %v879, %v1593
        %v1762 = vmul.f32 %v880, %v1594
        %v1763 = vmul.f32 %v881, %v1594
        %v1764 = vmul.f32 %v882, %v1594
        %v1765 = vmul.f32 %v883, %v1594
        %v1766 = vmul.f32 %v884, %v1595
        %v1767 = vmul.f32 %v885, %v1595
        %v1768 = vmul.f32 %v886, %v1595
        %v1769 = vmul.f32 %v887, %v1595
        %v1770 = vmul.f32 %v888, %v1596
        %v1771 = vmul.f32 %v889, %v1596
        %v1772 = vmul.f32 %v890, %v1596
        %v1773 = vmul.f32 %v891, %v1596
        %v1774 = vmul.f32 %v892, %v1597
        %v1775 = vmul.f32 %v893, %v1597
        %v1776 = vmul.f32 %v894, %v1597
        %v1777 = vmul.f32 %v895, %v1597
        %v1778 = vmul.f32 %v896, %v1598
        %v1779 = vmul.f32 %v897, %v1598
        %v1780 = vmul.f32 %v898, %v1598
        %v1781 = vmul.f32 %v899, %v1598
        %v1782 = vmul.f32 %v900, %v1599
        %v1783 = vmul.f32 %v901, %v1599
        %v1784 = vmul.f32 %v902, %v1599
        %v1785 = vmul.f32 %v903, %v1599
        %v1786 = vmul.f32 %v904, %v1600
        %v1787 = vmul.f32 %v905, %v1600
        %v1788 = vmul.f32 %v906, %v1600
        %v1789 = vmul.f32 %v907, %v1600
        %v1790 = vmul.f32 %v908, %v1601
        %v1791 = vmul.f32 %v909, %v1601
        %v1792 = vmul.f32 %v910, %v1601
        %v1793 = vmul.f32 %v911, %v1601
        %v1794 = vmul.f32 %v912, %v1602
        %v1795 = vmul.f32 %v913, %v1602
        %v1796 = vmul.f32 %v914, %v1602
        %v1797 = vmul.f32 %v915, %v1602
        %v1798 = vmul.f32 %v916, %v1603
        %v1799 = vmul.f32 %v917, %v1603
        %v1800 = vmul.f32 %v918, %v1603
        %v1801 = vmul.f32 %v919, %v1603
        %v1802 = vmul.f32 %v920, %v1604
        %v1803 = vmul.f32 %v921, %v1604
        %v1804 = vmul.f32 %v922, %v1604
        %v1805 = vmul.f32 %v923, %v1604
        %v1806 = vmul.f32 %v924, %v1605
        %v1807 = vmul.f32 %v925, %v1605
        %v1808 = vmul.f32 %v926, %v1605
        %v1809 = vmul.f32 %v927, %v1605
        %v1810 = vmul.f32 %v928, %v1606
        %v1811 = vmul.f32 %v929, %v1606
        %v1812 = vmul.f32 %v930, %v1606
        %v1813 = vmul.f32 %v931, %v1606
        %v1814 = vmul.f32 %v932, %v1607
        %v1815 = vmul.f32 %v933, %v1607
        %v1816 = vmul.f32 %v934, %v1607
        %v1817 = vmul.f32 %v935, %v1607
        %v1818 = vmul.f32 %v936, %v1608
        %v1819 = vmul.f32 %v937, %v1608
        %v1820 = vmul.f32 %v938, %v1608
        %v1821 = vmul.f32 %v939, %v1608
        %v1822 = vmul.f32 %v940, %v1609
        %v1823 = vmul.f32 %v941, %v1609
        %v1824 = vmul.f32 %v942, %v1609
        %v1825 = vmul.f32 %v943, %v1609
        %v1826 = vmul.f32 %v944, %v1610
        %v1827 = vmul.f32 %v945, %v1610
        %v1828 = vmul.f32 %v946, %v1610
        %v1829 = vmul.f32 %v947, %v1610
        %v1830 = vmul.f32 %v948, %v1611
        %v1831 = vmul.f32 %v949, %v1611
        %v1832 = vmul.f32 %v950, %v1611
        %v1833 = vmul.f32 %v951, %v1611
        %v1834 = vmul.f32 %v952, %v1612
        %v1835 = vmul.f32 %v953, %v1612
        %v1836 = vmul.f32 %v954, %v1612
        %v1837 = vmul.f32 %v955, %v1612
        %v1838 = vmul.f32 %v956, %v1613
        %v1839 = vmul.f32 %v957, %v1613
        %v1840 = vmul.f32 %v958, %v1613
        %v1841 = vmul.f32 %v959, %v1613
        %v1842 = vmul.f32 %v960, %v1614
        %v1843 = vmul.f32 %v961, %v1614
        %v1844 = vmul.f32 %v962, %v1614
        %v1845 = vmul.f32 %v963, %v1614
        %v1846 = vmul.f32 %v964, %v1615
        %v1847 = vmul.f32 %v965, %v1615
        %v1848 = vmul.f32 %v966, %v1615
        %v1849 = vmul.f32 %v967, %v1615
        %v1850 = vmul.f32 %v968, %v1616
        %v1851 = vmul.f32 %v969, %v1616
        %v1852 = vmul.f32 %v970, %v1616
        %v1853 = vmul.f32 %v971, %v1616
        %v1854 = vmul.f32 %v972, %v1617
        %v1855 = vmul.f32 %v973, %v1617
        %v1856 = vmul.f32 %v974, %v1617
        %v1857 = vmul.f32 %v975, %v1617
        %v1858 = vmul.f32 %v976, %v1618
        %v1859 = vmul.f32 %v977, %v1618
        %v1860 = vmul.f32 %v978, %v1618
        %v1861 = vmul.f32 %v979, %v1618
        %v1862 = vmul.f32 %v980, %v1619
        %v1863 = vmul.f32 %v981, %v1619
        %v1864 = vmul.f32 %v982, %v1619
        %v1865 = vmul.f32 %v983, %v1619
        %v1866 = vmul.f32 %v984, %v1620
        %v1867 = vmul.f32 %v985, %v1620
        %v1868 = vmul.f32 %v986, %v1620
        %v1869 = vmul.f32 %v987, %v1620
        %v1870 = vmul.f32 %v988, %v1621
        %v1871 = vmul.f32 %v989, %v1621
        %v1872 = vmul.f32 %v990, %v1621
        %v1873 = vmul.f32 %v991, %v1621
        %1874 = vst [vmem:[%s217] sm:$0xff] %v1622
        %1875 = vst [vmem:[%s217 + $0x8] sm:$0xff] %v1623
        %1876 = vst [vmem:[%s217 + $0x10] sm:$0xff] %v1624
        %1877 = vst [vmem:[%s217 + $0x18] sm:$0xff] %v1625
        %1878 = vst [vmem:[%s217 + $0x20] sm:$0xff] %v1626
        %1879 = vst [vmem:[%s217 + $0x28] sm:$0xff] %v1627
        %1880 = vst [vmem:[%s217 + $0x30] sm:$0xff] %v1628
        %1881 = vst [vmem:[%s217 + $0x38] sm:$0xff] %v1629
        %1882 = vst [vmem:[%s217 + $0x40] sm:$0xff] %v1630
        %1883 = vst [vmem:[%s217 + $0x48] sm:$0xff] %v1631
        %1884 = vst [vmem:[%s217 + $0x50] sm:$0xff] %v1632
        %1885 = vst [vmem:[%s217 + $0x58] sm:$0xff] %v1633
        %1886 = vst [vmem:[%s217 + $0x60] sm:$0xff] %v1634
        %1887 = vst [vmem:[%s217 + $0x68] sm:$0xff] %v1635
        %1888 = vst [vmem:[%s217 + $0x70] sm:$0xff] %v1636
        %1889 = vst [vmem:[%s217 + $0x78] sm:$0xff] %v1637
        %1890 = vst [vmem:[%s217 + $0x80] sm:$0xff] %v1638
        %1891 = vst [vmem:[%s217 + $0x88] sm:$0xff] %v1639
        %1892 = vst [vmem:[%s217 + $0x90] sm:$0xff] %v1640
        %1893 = vst [vmem:[%s217 + $0x98] sm:$0xff] %v1641
        %1894 = vst [vmem:[%s217 + $0xa0] sm:$0xff] %v1642
        %1895 = vst [vmem:[%s217 + $0xa8] sm:$0xff] %v1643
        %1896 = vst [vmem:[%s217 + $0xb0] sm:$0xff] %v1644
        %1897 = vst [vmem:[%s217 + $0xb8] sm:$0xff] %v1645
        %1898 = vst [vmem:[%s217 + $0xc0] sm:$0xff] %v1646
        %1899 = vst [vmem:[%s217 + $0xc8] sm:$0xff] %v1647
        %1900 = vst [vmem:[%s217 + $0xd0] sm:$0xff] %v1648
        %1901 = vst [vmem:[%s217 + $0xd8] sm:$0xff] %v1649
        %1902 = vst [vmem:[%s217 + $0xe0] sm:$0xff] %v1650
        %1903 = vst [vmem:[%s217 + $0xe8] sm:$0xff] %v1651
        %1904 = vst [vmem:[%s217 + $0xf0] sm:$0xff] %v1652
        %1905 = vst [vmem:[%s217 + $0xf8] sm:$0xff] %v1653
        %1906 = vst [vmem:[%s217 + $0x100] sm:$0xff] %v1654
        %1907 = vst [vmem:[%s217 + $0x108] sm:$0xff] %v1655
        %1908 = vst [vmem:[%s217 + $0x110] sm:$0xff] %v1656
        %1909 = vst [vmem:[%s217 + $0x118] sm:$0xff] %v1657
        %1910 = vst [vmem:[%s217 + $0x120] sm:$0xff] %v1658
        %1911 = vst [vmem:[%s217 + $0x128] sm:$0xff] %v1659
        %1912 = vst [vmem:[%s217 + $0x130] sm:$0xff] %v1660
        %1913 = vst [vmem:[%s217 + $0x138] sm:$0xff] %v1661
        %1914 = vst [vmem:[%s217 + $0x140] sm:$0xff] %v1662
        %1915 = vst [vmem:[%s217 + $0x148] sm:$0xff] %v1663
        %1916 = vst [vmem:[%s217 + $0x150] sm:$0xff] %v1664
        %1917 = vst [vmem:[%s217 + $0x158] sm:$0xff] %v1665
        %1918 = vst [vmem:[%s217 + $0x160] sm:$0xff] %v1666
        %1919 = vst [vmem:[%s217 + $0x168] sm:$0xff] %v1667
        %1920 = vst [vmem:[%s217 + $0x170] sm:$0xff] %v1668
        %1921 = vst [vmem:[%s217 + $0x178] sm:$0xff] %v1669
        %1922 = vst [vmem:[%s217 + $0x180] sm:$0xff] %v1670
        %1923 = vst [vmem:[%s217 + $0x188] sm:$0xff] %v1671
        %1924 = vst [vmem:[%s217 + $0x190] sm:$0xff] %v1672
        %1925 = vst [vmem:[%s217 + $0x198] sm:$0xff] %v1673
        %1926 = vst [vmem:[%s217 + $0x1a0] sm:$0xff] %v1674
        %1927 = vst [vmem:[%s217 + $0x1a8] sm:$0xff] %v1675
        %1928 = vst [vmem:[%s217 + $0x1b0] sm:$0xff] %v1676
        %1929 = vst [vmem:[%s217 + $0x1b8] sm:$0xff] %v1677
        %1930 = vst [vmem:[%s217 + $0x1c0] sm:$0xff] %v1678
        %1931 = vst [vmem:[%s217 + $0x1c8] sm:$0xff] %v1679
        %1932 = vst [vmem:[%s217 + $0x1d0] sm:$0xff] %v1680
        %1933 = vst [vmem:[%s217 + $0x1d8] sm:$0xff] %v1681
        %1934 = vst [vmem:[%s217 + $0x1e0] sm:$0xff] %v1682
        %1935 = vst [vmem:[%s217 + $0x1e8] sm:$0xff] %v1683
        %1936 = vst [vmem:[%s217 + $0x1f0] sm:$0xff] %v1684
        %1937 = vst [vmem:[%s217 + $0x1f8] sm:$0xff] %v1685
        %1938 = vst [vmem:[%s217 + $0x200] sm:$0xff] %v1686
        %1939 = vst [vmem:[%s217 + $0x208] sm:$0xff] %v1687
        %1940 = vst [vmem:[%s217 + $0x210] sm:$0xff] %v1688
        %1941 = vst [vmem:[%s217 + $0x218] sm:$0xff] %v1689
        %1942 = vst [vmem:[%s217 + $0x220] sm:$0xff] %v1690
        %1943 = vst [vmem:[%s217 + $0x228] sm:$0xff] %v1691
        %1944 = vst [vmem:[%s217 + $0x230] sm:$0xff] %v1692
        %1945 = vst [vmem:[%s217 + $0x238] sm:$0xff] %v1693
        %1946 = vst [vmem:[%s217 + $0x240] sm:$0xff] %v1694
        %1947 = vst [vmem:[%s217 + $0x248] sm:$0xff] %v1695
        %1948 = vst [vmem:[%s217 + $0x250] sm:$0xff] %v1696
        %1949 = vst [vmem:[%s217 + $0x258] sm:$0xff] %v1697
        %1950 = vst [vmem:[%s217 + $0x260] sm:$0xff] %v1698
        %1951 = vst [vmem:[%s217 + $0x268] sm:$0xff] %v1699
        %1952 = vst [vmem:[%s217 + $0x270] sm:$0xff] %v1700
        %1953 = vst [vmem:[%s217 + $0x278] sm:$0xff] %v1701
        %1954 = vst [vmem:[%s217 + $0x280] sm:$0xff] %v1702
        %1955 = vst [vmem:[%s217 + $0x288] sm:$0xff] %v1703
        %1956 = vst [vmem:[%s217 + $0x290] sm:$0xff] %v1704
        %1957 = vst [vmem:[%s217 + $0x298] sm:$0xff] %v1705
        %1958 = vst [vmem:[%s217 + $0x2a0] sm:$0xff] %v1706
        %1959 = vst [vmem:[%s217 + $0x2a8] sm:$0xff] %v1707
        %1960 = vst [vmem:[%s217 + $0x2b0] sm:$0xff] %v1708
        %1961 = vst [vmem:[%s217 + $0x2b8] sm:$0xff] %v1709
        %1962 = vst [vmem:[%s217 + $0x2c0] sm:$0xff] %v1710
        %1963 = vst [vmem:[%s217 + $0x2c8] sm:$0xff] %v1711
        %1964 = vst [vmem:[%s217 + $0x2d0] sm:$0xff] %v1712
        %1965 = vst [vmem:[%s217 + $0x2d8] sm:$0xff] %v1713
        %1966 = vst [vmem:[%s217 + $0x2e0] sm:$0xff] %v1714
        %1967 = vst [vmem:[%s217 + $0x2e8] sm:$0xff] %v1715
        %1968 = vst [vmem:[%s217 + $0x2f0] sm:$0xff] %v1716
        %1969 = vst [vmem:[%s217 + $0x2f8] sm:$0xff] %v1717
        %1970 = vst [vmem:[%s217 + $0x300] sm:$0xff] %v1718
        %1971 = vst [vmem:[%s217 + $0x308] sm:$0xff] %v1719
        %1972 = vst [vmem:[%s217 + $0x310] sm:$0xff] %v1720
        %1973 = vst [vmem:[%s217 + $0x318] sm:$0xff] %v1721
        %1974 = vst [vmem:[%s217 + $0x320] sm:$0xff] %v1722
        %1975 = vst [vmem:[%s217 + $0x328] sm:$0xff] %v1723
        %1976 = vst [vmem:[%s217 + $0x330] sm:$0xff] %v1724
        %1977 = vst [vmem:[%s217 + $0x338] sm:$0xff] %v1725
        %1978 = vst [vmem:[%s217 + $0x340] sm:$0xff] %v1726
        %1979 = vst [vmem:[%s217 + $0x348] sm:$0xff] %v1727
        %1980 = vst [vmem:[%s217 + $0x350] sm:$0xff] %v1728
        %1981 = vst [vmem:[%s217 + $0x358] sm:$0xff] %v1729
        %1982 = vst [vmem:[%s217 + $0x360] sm:$0xff] %v1730
        %1983 = vst [vmem:[%s217 + $0x368] sm:$0xff] %v1731
        %1984 = vst [vmem:[%s217 + $0x370] sm:$0xff] %v1732
        %1985 = vst [vmem:[%s217 + $0x378] sm:$0xff] %v1733
        %1986 = vst [vmem:[%s217 + $0x380] sm:$0xff] %v1734
        %1987 = vst [vmem:[%s217 + $0x388] sm:$0xff] %v1735
        %1988 = vst [vmem:[%s217 + $0x390] sm:$0xff] %v1736
        %1989 = vst [vmem:[%s217 + $0x398] sm:$0xff] %v1737
        %1990 = vst [vmem:[%s217 + $0x3a0] sm:$0xff] %v1738
        %1991 = vst [vmem:[%s217 + $0x3a8] sm:$0xff] %v1739
        %1992 = vst [vmem:[%s217 + $0x3b0] sm:$0xff] %v1740
        %1993 = vst [vmem:[%s217 + $0x3b8] sm:$0xff] %v1741
        %1994 = vst [vmem:[%s217 + $0x3c0] sm:$0xff] %v1742
        %1995 = vst [vmem:[%s217 + $0x3c8] sm:$0xff] %v1743
        %1996 = vst [vmem:[%s217 + $0x3d0] sm:$0xff] %v1744
        %1997 = vst [vmem:[%s217 + $0x3d8] sm:$0xff] %v1745
        %1998 = vst [vmem:[%s217 + $0x3e0] sm:$0xff] %v1746
        %1999 = vst [vmem:[%s217 + $0x3e8] sm:$0xff] %v1747
        %2000 = vst [vmem:[%s217 + $0x3f0] sm:$0xff] %v1748
        %2001 = vst [vmem:[%s217 + $0x3f8] sm:$0xff] %v1749
        %2002 = vst [vmem:[%s217 + $0x400] sm:$0xff] %v1750
        %2003 = vst [vmem:[%s217 + $0x408] sm:$0xff] %v1751
        %2004 = vst [vmem:[%s217 + $0x410] sm:$0xff] %v1752
        %2005 = vst [vmem:[%s217 + $0x418] sm:$0xff] %v1753
        %2006 = vst [vmem:[%s217 + $0x420] sm:$0xff] %v1754
        %2007 = vst [vmem:[%s217 + $0x428] sm:$0xff] %v1755
        %2008 = vst [vmem:[%s217 + $0x430] sm:$0xff] %v1756
        %2009 = vst [vmem:[%s217 + $0x438] sm:$0xff] %v1757
        %2010 = vst [vmem:[%s217 + $0x440] sm:$0xff] %v1758
        %2011 = vst [vmem:[%s217 + $0x448] sm:$0xff] %v1759
        %2012 = vst [vmem:[%s217 + $0x450] sm:$0xff] %v1760
        %2013 = vst [vmem:[%s217 + $0x458] sm:$0xff] %v1761
        %2014 = vst [vmem:[%s217 + $0x460] sm:$0xff] %v1762
        %2015 = vst [vmem:[%s217 + $0x468] sm:$0xff] %v1763
        %2016 = vst [vmem:[%s217 + $0x470] sm:$0xff] %v1764
        %2017 = vst [vmem:[%s217 + $0x478] sm:$0xff] %v1765
        %2018 = vst [vmem:[%s217 + $0x480] sm:$0xff] %v1766
        %2019 = vst [vmem:[%s217 + $0x488] sm:$0xff] %v1767
        %2020 = vst [vmem:[%s217 + $0x490] sm:$0xff] %v1768
        %2021 = vst [vmem:[%s217 + $0x498] sm:$0xff] %v1769
        %2022 = vst [vmem:[%s217 + $0x4a0] sm:$0xff] %v1770
        %2023 = vst [vmem:[%s217 + $0x4a8] sm:$0xff] %v1771
        %2024 = vst [vmem:[%s217 + $0x4b0] sm:$0xff] %v1772
        %2025 = vst [vmem:[%s217 + $0x4b8] sm:$0xff] %v1773
        %2026 = vst [vmem:[%s217 + $0x4c0] sm:$0xff] %v1774
        %2027 = vst [vmem:[%s217 + $0x4c8] sm:$0xff] %v1775
        %2028 = vst [vmem:[%s217 + $0x4d0] sm:$0xff] %v1776
        %2029 = vst [vmem:[%s217 + $0x4d8] sm:$0xff] %v1777
        %2030 = vst [vmem:[%s217 + $0x4e0] sm:$0xff] %v1778
        %2031 = vst [vmem:[%s217 + $0x4e8] sm:$0xff] %v1779
        %2032 = vst [vmem:[%s217 + $0x4f0] sm:$0xff] %v1780
        %2033 = vst [vmem:[%s217 + $0x4f8] sm:$0xff] %v1781
        %2034 = vst [vmem:[%s217 + $0x500] sm:$0xff] %v1782
        %2035 = vst [vmem:[%s217 + $0x508] sm:$0xff] %v1783
        %2036 = vst [vmem:[%s217 + $0x510] sm:$0xff] %v1784
        %2037 = vst [vmem:[%s217 + $0x518] sm:$0xff] %v1785
        %2038 = vst [vmem:[%s217 + $0x520] sm:$0xff] %v1786
        %2039 = vst [vmem:[%s217 + $0x528] sm:$0xff] %v1787
        %2040 = vst [vmem:[%s217 + $0x530] sm:$0xff] %v1788
        %2041 = vst [vmem:[%s217 + $0x538] sm:$0xff] %v1789
        %2042 = vst [vmem:[%s217 + $0x540] sm:$0xff] %v1790
        %2043 = vst [vmem:[%s217 + $0x548] sm:$0xff] %v1791
        %2044 = vst [vmem:[%s217 + $0x550] sm:$0xff] %v1792
        %2045 = vst [vmem:[%s217 + $0x558] sm:$0xff] %v1793
        %2046 = vst [vmem:[%s217 + $0x560] sm:$0xff] %v1794
        %2047 = vst [vmem:[%s217 + $0x568] sm:$0xff] %v1795
        %2048 = vst [vmem:[%s217 + $0x570] sm:$0xff] %v1796
        %2049 = vst [vmem:[%s217 + $0x578] sm:$0xff] %v1797
        %2050 = vst [vmem:[%s217 + $0x580] sm:$0xff] %v1798
        %2051 = vst [vmem:[%s217 + $0x588] sm:$0xff] %v1799
        %2052 = vst [vmem:[%s217 + $0x590] sm:$0xff] %v1800
        %2053 = vst [vmem:[%s217 + $0x598] sm:$0xff] %v1801
        %2054 = vst [vmem:[%s217 + $0x5a0] sm:$0xff] %v1802
        %2055 = vst [vmem:[%s217 + $0x5a8] sm:$0xff] %v1803
        %2056 = vst [vmem:[%s217 + $0x5b0] sm:$0xff] %v1804
        %2057 = vst [vmem:[%s217 + $0x5b8] sm:$0xff] %v1805
        %2058 = vst [vmem:[%s217 + $0x5c0] sm:$0xff] %v1806
        %2059 = vst [vmem:[%s217 + $0x5c8] sm:$0xff] %v1807
        %2060 = vst [vmem:[%s217 + $0x5d0] sm:$0xff] %v1808
        %2061 = vst [vmem:[%s217 + $0x5d8] sm:$0xff] %v1809
        %2062 = vst [vmem:[%s217 + $0x5e0] sm:$0xff] %v1810
        %2063 = vst [vmem:[%s217 + $0x5e8] sm:$0xff] %v1811
        %2064 = vst [vmem:[%s217 + $0x5f0] sm:$0xff] %v1812
        %2065 = vst [vmem:[%s217 + $0x5f8] sm:$0xff] %v1813
        %2066 = vst [vmem:[%s217 + $0x600] sm:$0xff] %v1814
        %2067 = vst [vmem:[%s217 + $0x608] sm:$0xff] %v1815
        %2068 = vst [vmem:[%s217 + $0x610] sm:$0xff] %v1816
        %2069 = vst [vmem:[%s217 + $0x618] sm:$0xff] %v1817
        %2070 = vst [vmem:[%s217 + $0x620] sm:$0xff] %v1818
        %2071 = vst [vmem:[%s217 + $0x628] sm:$0xff] %v1819
        %2072 = vst [vmem:[%s217 + $0x630] sm:$0xff] %v1820
        %2073 = vst [vmem:[%s217 + $0x638] sm:$0xff] %v1821
        %2074 = vst [vmem:[%s217 + $0x640] sm:$0xff] %v1822
        %2075 = vst [vmem:[%s217 + $0x648] sm:$0xff] %v1823
        %2076 = vst [vmem:[%s217 + $0x650] sm:$0xff] %v1824
        %2077 = vst [vmem:[%s217 + $0x658] sm:$0xff] %v1825
        %2078 = vst [vmem:[%s217 + $0x660] sm:$0xff] %v1826
        %2079 = vst [vmem:[%s217 + $0x668] sm:$0xff] %v1827
        %2080 = vst [vmem:[%s217 + $0x670] sm:$0xff] %v1828
        %2081 = vst [vmem:[%s217 + $0x678] sm:$0xff] %v1829
        %2082 = vst [vmem:[%s217 + $0x680] sm:$0xff] %v1830
        %2083 = vst [vmem:[%s217 + $0x688] sm:$0xff] %v1831
        %2084 = vst [vmem:[%s217 + $0x690] sm:$0xff] %v1832
        %2085 = vst [vmem:[%s217 + $0x698] sm:$0xff] %v1833
        %2086 = vst [vmem:[%s217 + $0x6a0] sm:$0xff] %v1834
        %2087 = vst [vmem:[%s217 + $0x6a8] sm:$0xff] %v1835
        %2088 = vst [vmem:[%s217 + $0x6b0] sm:$0xff] %v1836
        %2089 = vst [vmem:[%s217 + $0x6b8] sm:$0xff] %v1837
        %2090 = vst [vmem:[%s217 + $0x6c0] sm:$0xff] %v1838
        %2091 = vst [vmem:[%s217 + $0x6c8] sm:$0xff] %v1839
        %2092 = vst [vmem:[%s217 + $0x6d0] sm:$0xff] %v1840
        %2093 = vst [vmem:[%s217 + $0x6d8] sm:$0xff] %v1841
        %2094 = vst [vmem:[%s217 + $0x6e0] sm:$0xff] %v1842
        %2095 = vst [vmem:[%s217 + $0x6e8] sm:$0xff] %v1843
        %2096 = vst [vmem:[%s217 + $0x6f0] sm:$0xff] %v1844
        %2097 = vst [vmem:[%s217 + $0x6f8] sm:$0xff] %v1845
        %2098 = vst [vmem:[%s217 + $0x700] sm:$0xff] %v1846
        %2099 = vst [vmem:[%s217 + $0x708] sm:$0xff] %v1847
        %2100 = vst [vmem:[%s217 + $0x710] sm:$0xff] %v1848
        %2101 = vst [vmem:[%s217 + $0x718] sm:$0xff] %v1849
        %2102 = vst [vmem:[%s217 + $0x720] sm:$0xff] %v1850
        %2103 = vst [vmem:[%s217 + $0x728] sm:$0xff] %v1851
        %2104 = vst [vmem:[%s217 + $0x730] sm:$0xff] %v1852
        %2105 = vst [vmem:[%s217 + $0x738] sm:$0xff] %v1853
        %2106 = vst [vmem:[%s217 + $0x740] sm:$0xff] %v1854
        %2107 = vst [vmem:[%s217 + $0x748] sm:$0xff] %v1855
        %2108 = vst [vmem:[%s217 + $0x750] sm:$0xff] %v1856
        %2109 = vst [vmem:[%s217 + $0x758] sm:$0xff] %v1857
        %2110 = vst [vmem:[%s217 + $0x760] sm:$0xff] %v1858
        %2111 = vst [vmem:[%s217 + $0x768] sm:$0xff] %v1859
        %2112 = vst [vmem:[%s217 + $0x770] sm:$0xff] %v1860
        %2113 = vst [vmem:[%s217 + $0x778] sm:$0xff] %v1861
        %2114 = vst [vmem:[%s217 + $0x780] sm:$0xff] %v1862
        %2115 = vst [vmem:[%s217 + $0x788] sm:$0xff] %v1863
        %2116 = vst [vmem:[%s217 + $0x790] sm:$0xff] %v1864
        %2117 = vst [vmem:[%s217 + $0x798] sm:$0xff] %v1865
        %2118 = vst [vmem:[%s217 + $0x7a0] sm:$0xff] %v1866
        %2119 = vst [vmem:[%s217 + $0x7a8] sm:$0xff] %v1867
        %2120 = vst [vmem:[%s217 + $0x7b0] sm:$0xff] %v1868
        %2121 = vst [vmem:[%s217 + $0x7b8] sm:$0xff] %v1869
        %2122 = vst [vmem:[%s217 + $0x7c0] sm:$0xff] %v1870
        %2123 = vst [vmem:[%s217 + $0x7c8] sm:$0xff] %v1871
        %2124 = vst [vmem:[%s217 + $0x7d0] sm:$0xff] %v1872
        %2125 = vst [vmem:[%s217 + $0x7d8] sm:$0xff] %v1873
        %s2126 = sand.u32 %s82, 1
        %s2127 = scalar_lea.sflag [#allocation4], %s2126
        %s2128 = sand.u32 %s82, 1
        %s2129 = smul.addr %s2128, 2016
        %s2130 = scalar_lea.vmem [#allocation7], %s2129
        // Predicated region
        $region37: #{tpu_custom_call.1} parent=27 // pred_check
          %p2131 = pneg %p92
        $region38: #{tpu_custom_call.1} parent=27 // pred_check_branch
          %2133 = sbr.rel (%p2131) target = $region40
        $region39: #{tpu_custom_call.1} parent=27 // pred_region
          %s2134 = smul.u32 63, %s22
          %s2135 = ssub.s32 125, %s2134
          %p2136 = scmp.lt.s32.totalorder %s2135, 63
          %s2137 = scalar_select %p2136, %s2135, 63
          %s2138 = smul.u32 128, %s2137
          %s2139 = smul.u32 %s2138, 4
          %s2141 = ssub.s32 32256, %s2139
          %2142 = vsyncadd %s2127, %s2141
          %p2143 = scmp.ne.s32.totalorder 0, %s2139
          %s2144 = smul.addr %s2134, 4
          %s2145 = smul.addr %s2144, 128
          %s2146 = scalar_lea.hbm %s2, %s2145
          %s2147 = smul.u32 32, %s2137
          %s2148 = sshll.u32 %s2130, 4
          %s2149 = int_to_ptr.vmem [resolvable:$true] %s2148
          %s2150 = sshll.u32 %s2147, 4
          %2154 = dma.vmem_to_hbm [thread:$0]  (%p2143), %s2149, %s2150, %s2146, %s2127, 512, 512, 32
        $region40: #{tpu_custom_call.1} parent=27 // pred_fallthru
          _
      $region28: #{tpu_custom_call.1} parent=5 // pred_fallthru
        _
      %p2155 = scmp.le.s32.totalorder 2, %s17
      // Predicated region
      $region41: #{tpu_custom_call.1} parent=5 // pred_check
        %p2156 = pneg %p2155
      $region42: #{tpu_custom_call.1} parent=5 // pred_check_branch
        %2158 = sbr.rel (%p2156) target = $region44
      $region43: #{tpu_custom_call.1} parent=5 // pred_region
        %s2159 = ssub.s32 %s17, 2
        // Predicated region
        $region45: #{tpu_custom_call.1} parent=43 // pred_check
          %p2160 = pneg %p98
        $region46: #{tpu_custom_call.1} parent=43 // pred_check_branch
          %2162 = sbr.rel (%p2160) target = $region48
        $region47: #{tpu_custom_call.1} parent=43 // pred_region
          %s2163 = sand.u32 %s83, 1
          %s2164 = scalar_lea.sflag [#allocation4], %s2163
          %s2165 = sand.u32 %s83, 1
          %s2166 = smul.addr %s2165, 2016
          %s2167 = scalar_lea.vmem [#allocation7], %s2166
          %2168 = dma.done %s2164, 32256
        $region48: #{tpu_custom_call.1} parent=43 // pred_fallthru
          _
      $region44: #{tpu_custom_call.1} parent=5 // pred_fallthru
        _
    $region6: #{tpu_custom_call.1} parent=1 // loop_footer
      %s21 = sadd.s32 1, %s17
    $region7: #{tpu_custom_call.1} parent=1 // loop_footer_branch
      %16 = sbr.rel target = $region3
    $region8: #{tpu_custom_call.1} parent=1 // loop_exit
      _
    %2169 = vsyncpa [#allocation3], 1
    %s2170 = scalar_lea.sflag [#allocation3], 1
    %2171 = vsyncpa %s2170, 1
    %2172 = vsyncpa [#allocation6], 1
    %s2173 = scalar_lea.sflag [#allocation6], 1
    %2174 = vsyncpa %s2173, 1
    %2175 = vsyncpa [#allocation4], 1
    %s2176 = scalar_lea.sflag [#allocation4], 1
    %2177 = vsyncpa %s2176, 1

</llo_original>
